<compile_context>
chip_gen: v6e
topology: v6e:2x2x1
jax: 0.10.0
libtpu: 0.0.40
codegen_flags: <defaults>
</compile_context>

<pallas_src>
import functools

import jax
import jax.numpy as jnp
from jax.experimental import pallas as pl
from jax.experimental.pallas import tpu as pltpu


def _round_up(v, m):
    return ((v + m - 1) // m) * m


def _triplet_semihard_kernel(xi_ref, xj_ref, rsq_ref, csq_ref, li_ref, lj_ref,
                             out_ref, pos_acc_ref, neg_acc_ref, *, margin):
    # xi_ref:  (TM, Cp) bf16 row tile of embeddings
    # xj_ref:  (TN, Cp) bf16 column tile of embeddings
    # rsq_ref: (TM, 1)  f32 row squared norms (precomputed in the wrapper)
    # csq_ref: (1, TN)  f32 column squared norms (lane-dense)
    # li_ref:  (TM, 1)  int32 row labels
    # lj_ref:  (1, TN)  int32 column labels (padded with -1 sentinel)
    # out_ref: (TM, 1)  per-row hinge loss (written only at the last j step)
    # pos_acc_ref / neg_acc_ref: (TM, TN) lane-dense running max/min of dist^2
    j = pl.program_id(1)
    nj = pl.num_programs(1)

    @pl.when(j == 0)
    def _init():
        pos_acc_ref[...] = jnp.full(pos_acc_ref.shape, -jnp.inf, jnp.float32)
        neg_acc_ref[...] = jnp.full(neg_acc_ref.shape, jnp.inf, jnp.float32)

    # Gram tile on the MXU: bf16 operands, f32 accumulation, contracting the
    # channel dim of both operands directly (no transpose temp).
    gram = jax.lax.dot_general(
        xi_ref[...], xj_ref[...],
        dimension_numbers=(((1,), (1,)), ((), ())),
        preferred_element_type=jnp.float32)                        # (TM, TN)

    # Squared pairwise distances from the precomputed f32 norms.
    dist_sq = (rsq_ref[...] + csq_ref[...]) - 2.0 * gram           # (TM, TN)

    li = li_ref[...]                                               # (TM, 1)
    lj = lj_ref[...]                                               # (1, TN)
    same_id = li == lj                                             # (TM, TN) bool
    # Padded columns carry the -1 sentinel label: never equal to a real label
    # (so they can't be positives) and gated out of negatives via lj >= 0.
    valid_neg = jnp.logical_and(jnp.logical_not(same_id), lj >= 0)

    # Lane-dense running accumulators: elementwise max/min per j step on the
    # VPU; the cross-lane (XLU) reduction runs once, at finalize.
    pos_acc_ref[...] = jnp.maximum(pos_acc_ref[...],
                                   jnp.where(same_id, dist_sq, -jnp.inf))
    neg_acc_ref[...] = jnp.minimum(neg_acc_ref[...],
                                   jnp.where(valid_neg, dist_sq, jnp.inf))

    @pl.when(j == nj - 1)
    def _finalize():
        pos_sq = jnp.max(pos_acc_ref[...], axis=1, keepdims=True)  # (TM, 1)
        neg_sq = jnp.min(neg_acc_ref[...], axis=1, keepdims=True)  # (TM, 1)
        # sqrt only on the (TM, 1) reductions; clamp before sqrt keeps the
        # (possibly slightly negative) bf16 self-distance out of NaN land.
        pos = jnp.sqrt(jnp.maximum(pos_sq, 1e-16))
        neg = jnp.sqrt(jnp.maximum(neg_sq, 1e-16))
        out_ref[...] = jnp.maximum(pos - neg + margin, 0.0).astype(jnp.float32)


def _choose_tiles(n):
    """Pick (TM, TN, n_pad).

    TN spans the whole column axis whenever it fits (N <= 1024) so the
    reduction grid axis vanishes; otherwise TN=1024, TM=256.  TM is kept at
    128 for small N so the 'parallel' row axis has >= 2 tiles and both v7x
    TensorCores get work.  Worst-case live VMEM (accumulators + f32
    temporaries + bf16 tiles) stays comfortably under the 32 MiB default
    scoped limit on every generation, including v7x's 64 MiB chip.
    """
    tm = 128 if n <= 256 else 256
    if n <= 1024:
        n_pad = _round_up(n, tm)
        tn = n_pad
    else:
        tm, tn = 256, 1024
        n_pad = _round_up(n, 1024)   # lcm(tm, tn)
    return tm, tn, n_pad


def triplet_semihard_loss(x, target, margin=0.0, size_average=True):
    """Pallas-backed forward of TripletSemihardLoss.

    x:      (N, C) float embeddings
    target: (N,)   integer class labels
    returns scalar float32 loss
    """
    n, c = x.shape
    tm, tn, n_pad = _choose_tiles(n)
    c_pad = _round_up(c, 128)

    xf = x.astype(jnp.float32)
    # bf16 embeddings for the MXU Gram (halves DMA bytes); norms stay f32 and
    # are computed once here instead of once per tile inside the kernel.
    x_bf = jnp.pad(xf, ((0, n_pad - n), (0, c_pad - c))).astype(jnp.bfloat16)
    row_sq = jnp.pad(jnp.sum(xf * xf, axis=1, keepdims=True),
                     ((0, n_pad - n), (0, 0)))                      # (Np, 1) f32
    col_sq = row_sq.reshape(1, n_pad)                               # (1, Np) f32
    lbl = jnp.pad(target.astype(jnp.int32), (0, n_pad - n),
                  constant_values=-1)                               # -1 sentinel
    lbl_col = lbl[:, None]                                          # (Np, 1)
    lbl_row = lbl[None, :]                                          # (1, Np)

    gi = n_pad // tm
    gj = n_pad // tn

    kernel = functools.partial(_triplet_semihard_kernel, margin=float(margin))

    per_row = pl.pallas_call(
        kernel,
        out_shape=jax.ShapeDtypeStruct((n_pad, 1), jnp.float32),
        grid_spec=pltpu.PrefetchScalarGridSpec(
            num_scalar_prefetch=0,
            grid=(gi, gj),
            in_specs=[
                pl.BlockSpec((tm, c_pad), lambda i, j: (i, 0)),   # row tile of x
                pl.BlockSpec((tn, c_pad), lambda i, j: (j, 0)),   # col tile of x
                pl.BlockSpec((tm, 1), lambda i, j: (i, 0)),       # row sq norms
                pl.BlockSpec((1, tn), lambda i, j: (0, j)),       # col sq norms
                pl.BlockSpec((tm, 1), lambda i, j: (i, 0)),       # row labels
                pl.BlockSpec((1, tn), lambda i, j: (0, j)),       # col labels
            ],
            out_specs=pl.BlockSpec((tm, 1), lambda i, j: (i, 0)),
            scratch_shapes=[pltpu.VMEM((tm, tn), jnp.float32),
                            pltpu.VMEM((tm, tn), jnp.float32)],
        ),
        compiler_params=pltpu.CompilerParams(
            dimension_semantics=("parallel", "arbitrary")),
    )(x_bf, x_bf, row_sq, col_sq, lbl_col, lbl_row)

    per_row = per_row[:n, 0]   # strip padded rows before the mean/sum
    return jnp.mean(per_row) if size_average else jnp.sum(per_row)


def _reference_loss(x, target, margin=0.0, size_average=True):
    # Pure-JAX mirror of the PyTorch module (exact f32 math, +-1e6 masking).
    x = x.astype(jnp.float32)
    y_true = target.astype(jnp.int32).reshape(-1, 1)
    same_id = (y_true == y_true.T).astype(jnp.float32)
    sq = jnp.sum(x ** 2, axis=1, keepdims=True)
    dist_sq = sq + sq.T - 2.0 * (x @ x.T)
    dist = jnp.sqrt(jnp.maximum(dist_sq, 1e-16))
    pos_max = jnp.max(dist - 1e6 * (1.0 - same_id), axis=-1)
    neg_min = jnp.min(dist + 1e6 * same_id, axis=-1)
    per = jnp.maximum(pos_max - neg_min + margin, 0.0)
    return jnp.mean(per) if size_average else jnp.sum(per)


def _reference_kernel_math(x, target, margin=0.0, size_average=True):
    # Mirrors the kernel's math exactly (f32 norms, bf16 Gram, where-masking,
    # deferred sqrt).
    xf = x.astype(jnp.float32)
    xb = x.astype(jnp.bfloat16)
    y = target.astype(jnp.int32).reshape(-1, 1)
    same = y == y.T
    gram = jax.lax.dot_general(xb, xb, (((1,), (1,)), ((), ())),
                               preferred_element_type=jnp.float32)
    rsq = jnp.sum(xf * xf, axis=1, keepdims=True)
    dsq = (rsq + rsq.T) - 2.0 * gram
    pos_sq = jnp.max(jnp.where(same, dsq, -jnp.inf), axis=-1)
    neg_sq = jnp.min(jnp.where(~same, dsq, jnp.inf), axis=-1)
    pos = jnp.sqrt(jnp.maximum(pos_sq, 1e-16))
    neg = jnp.sqrt(jnp.maximum(neg_sq, 1e-16))
    per = jnp.maximum(pos - neg + margin, 0.0)
    return jnp.mean(per) if size_average else jnp.sum(per)


if __name__ == "__main__":
    key = jax.random.PRNGKey(0)
    N, C = 256, 32                     # 8 identities x 32 samples, 32-dim embeddings
    x = jax.random.normal(key, (N, C), dtype=jnp.float32)
    target = jnp.arange(N, dtype=jnp.int32) % 8
    margin = 0.3

    loss = jax.block_until_ready(triplet_semihard_loss(x, target, margin, True))

    # Tight check against a reference that replicates the kernel's math.
    ref_k = jax.block_until_ready(_reference_kernel_math(x, target, margin, True))
    assert jnp.allclose(loss, ref_k, atol=1e-3, rtol=1e-3), (loss, ref_k)

    # Loose check against the exact-f32 mirror of the PyTorch module (the bf16
    # Gram only perturbs the loss at the sub-percent level at these shapes).
    ref = jax.block_until_ready(_reference_loss(x, target, margin, True))
    assert jnp.allclose(loss, ref, atol=5e-2, rtol=5e-2), (loss, ref)

    print("KERNEL_OK")
</pallas_src>

<mosaic_0001>
module attributes {stable_mosaic.version = 11 : i64} {
  func.func @_triplet_semihard_kernel(%arg0: i32, %arg1: i32, %arg2: memref<128x128xbf16, #tpu.memory_space<vmem>>, %arg3: memref<256x128xbf16, #tpu.memory_space<vmem>>, %arg4: memref<128x1xf32, #tpu.memory_space<vmem>>, %arg5: memref<1x256xf32, #tpu.memory_space<vmem>>, %arg6: memref<128x1xi32, #tpu.memory_space<vmem>>, %arg7: memref<1x256xi32, #tpu.memory_space<vmem>>, %arg8: memref<128x1xf32, #tpu.memory_space<vmem>>, %arg9: memref<128x256xf32, #tpu.memory_space<vmem>>, %arg10: memref<128x256xf32, #tpu.memory_space<vmem>>) attributes {dimension_semantics = [#tpu.dimension_semantics<parallel>, #tpu.dimension_semantics<arbitrary>], iteration_bounds = array<i64: 2, 1>, scalar_prefetch = 0 : i64, scratch_operands = 2 : i64, tpu.core_type = #tpu.core_type<tc>, window_params = [{transform_indices = @transform_0, window_bounds = array<i64: 128, 128>}, {transform_indices = @transform_1, window_bounds = array<i64: 256, 128>}, {transform_indices = @transform_2, window_bounds = array<i64: 128, 1>}, {transform_indices = @transform_3, window_bounds = array<i64: 1, 256>}, {transform_indices = @transform_4, window_bounds = array<i64: 128, 1>}, {transform_indices = @transform_5, window_bounds = array<i64: 1, 256>}, {transform_indices = @transform_6, window_bounds = array<i64: 128, 1>}]} {
    %c0_i32 = arith.constant 0 : i32
    %0 = arith.cmpi eq, %arg1, %c0_i32 : i32
    %1 = arith.extui %0 : i1 to i32
    %c0_i32_0 = arith.constant 0 : i32
    %2 = arith.cmpi ne, %1, %c0_i32_0 : i32
    scf.if %2 {
      %cst_27 = arith.constant 0xFF800000 : f32
      %37 = vector.broadcast %cst_27 : f32 to vector<128x256xf32>
      %c0_28 = arith.constant 0 : index
      %c0_29 = arith.constant 0 : index
      %38 = vector.load %arg9[%c0_28, %c0_29] : memref<128x256xf32, #tpu.memory_space<vmem>>, vector<128x256xf32>
      tpu.vector_store %arg9[%c0_28, %c0_29], %37 {strides = array<i32>} : memref<128x256xf32, #tpu.memory_space<vmem>>, vector<128x256xf32>,
      %cst_30 = arith.constant 0x7F800000 : f32
      %39 = vector.broadcast %cst_30 : f32 to vector<128x256xf32>
      %c0_31 = arith.constant 0 : index
      %c0_32 = arith.constant 0 : index
      %40 = vector.load %arg10[%c0_31, %c0_32] : memref<128x256xf32, #tpu.memory_space<vmem>>, vector<128x256xf32>
      tpu.vector_store %arg10[%c0_31, %c0_32], %39 {strides = array<i32>} : memref<128x256xf32, #tpu.memory_space<vmem>>, vector<128x256xf32>,
    } else {
    }
    %c0 = arith.constant 0 : index
    %c0_1 = arith.constant 0 : index
    %3 = vector.load %arg2[%c0, %c0_1] : memref<128x128xbf16, #tpu.memory_space<vmem>>, vector<128x128xbf16>
    %c0_2 = arith.constant 0 : index
    %c0_3 = arith.constant 0 : index
    %4 = vector.load %arg3[%c0_2, %c0_3] : memref<256x128xbf16, #tpu.memory_space<vmem>>, vector<256x128xbf16>
    %cst = arith.constant dense<0.000000e+00> : vector<128x256xf32>
    %5 = tpu.matmul %3, %4, %cst {dimension_numbers = #tpu.dot_dimension_numbers<[1], [1], [0], [0], [0, 0, 1, 0], [], []>} : vector<128x128xbf16>, vector<256x128xbf16>, vector<128x256xf32> -> vector<128x256xf32>
    %c0_4 = arith.constant 0 : index
    %c0_5 = arith.constant 0 : index
    %6 = vector.load %arg4[%c0_4, %c0_5] : memref<128x1xf32, #tpu.memory_space<vmem>>, vector<128x1xf32>
    %c0_6 = arith.constant 0 : index
    %c0_7 = arith.constant 0 : index
    %7 = vector.load %arg5[%c0_6, %c0_7] : memref<1x256xf32, #tpu.memory_space<vmem>>, vector<1x256xf32>
    %8 = vector.broadcast %6 : vector<128x1xf32> to vector<128x256xf32>
    %9 = vector.broadcast %7 : vector<1x256xf32> to vector<128x256xf32>
    %10 = arith.addf %8, %9 : vector<128x256xf32>
    %cst_8 = arith.constant 2.000000e+00 : f32
    %11 = vector.broadcast %cst_8 : f32 to vector<128x256xf32>
    %12 = arith.mulf %11, %5 : vector<128x256xf32>
    %13 = arith.subf %10, %12 : vector<128x256xf32>
    %c0_9 = arith.constant 0 : index
    %c0_10 = arith.constant 0 : index
    %14 = vector.load %arg6[%c0_9, %c0_10] : memref<128x1xi32, #tpu.memory_space<vmem>>, vector<128x1xi32>
    %c0_11 = arith.constant 0 : index
    %c0_12 = arith.constant 0 : index
    %15 = vector.load %arg7[%c0_11, %c0_12] : memref<1x256xi32, #tpu.memory_space<vmem>>, vector<1x256xi32>
    %16 = vector.broadcast %14 : vector<128x1xi32> to vector<128x256xi32>
    %17 = vector.broadcast %15 : vector<1x256xi32> to vector<128x256xi32>
    %18 = arith.cmpi eq, %16, %17 : vector<128x256xi32>
    %cst_13 = arith.constant dense<true> : vector<128x256xi1>
    %19 = arith.xori %18, %cst_13 : vector<128x256xi1>
    %c0_i32_14 = arith.constant 0 : i32
    %20 = vector.broadcast %c0_i32_14 : i32 to vector<1x256xi32>
    %21 = arith.cmpi sge, %15, %20 : vector<1x256xi32>
    %22 = vector.broadcast %21 : vector<1x256xi1> to vector<128x256xi1>
    %23 = arith.andi %19, %22 : vector<128x256xi1>
    %c0_15 = arith.constant 0 : index
    %c0_16 = arith.constant 0 : index
    %24 = vector.load %arg9[%c0_15, %c0_16] : memref<128x256xf32, #tpu.memory_space<vmem>>, vector<128x256xf32>
    %cst_17 = arith.constant 0xFF800000 : f32
    %25 = vector.broadcast %cst_17 : f32 to vector<128x256xf32>
    %26 = arith.select %18, %13, %25 : vector<128x256xi1>, vector<128x256xf32>
    %27 = arith.maximumf %24, %26 : vector<128x256xf32>
    %c0_18 = arith.constant 0 : index
    %c0_19 = arith.constant 0 : index
    %28 = vector.load %arg9[%c0_18, %c0_19] : memref<128x256xf32, #tpu.memory_space<vmem>>, vector<128x256xf32>
    tpu.vector_store %arg9[%c0_18, %c0_19], %27 {strides = array<i32>} : memref<128x256xf32, #tpu.memory_space<vmem>>, vector<128x256xf32>,
    %c0_20 = arith.constant 0 : index
    %c0_21 = arith.constant 0 : index
    %29 = vector.load %arg10[%c0_20, %c0_21] : memref<128x256xf32, #tpu.memory_space<vmem>>, vector<128x256xf32>
    %cst_22 = arith.constant 0x7F800000 : f32
    %30 = vector.broadcast %cst_22 : f32 to vector<128x256xf32>
    %31 = arith.select %23, %13, %30 : vector<128x256xi1>, vector<128x256xf32>
    %32 = arith.minimumf %29, %31 : vector<128x256xf32>
    %c0_23 = arith.constant 0 : index
    %c0_24 = arith.constant 0 : index
    %33 = vector.load %arg10[%c0_23, %c0_24] : memref<128x256xf32, #tpu.memory_space<vmem>>, vector<128x256xf32>
    tpu.vector_store %arg10[%c0_23, %c0_24], %32 {strides = array<i32>} : memref<128x256xf32, #tpu.memory_space<vmem>>, vector<128x256xf32>,
    %c0_i32_25 = arith.constant 0 : i32
    %34 = arith.cmpi eq, %arg1, %c0_i32_25 : i32
    %35 = arith.extui %34 : i1 to i32
    %c0_i32_26 = arith.constant 0 : i32
    %36 = arith.cmpi ne, %35, %c0_i32_26 : i32
    scf.if %36 {
      %c0_27 = arith.constant 0 : index
      %c0_28 = arith.constant 0 : index
      %37 = vector.load %arg9[%c0_27, %c0_28] : memref<128x256xf32, #tpu.memory_space<vmem>>, vector<128x256xf32>
      %cst_29 = arith.constant dense<0xFF800000> : vector<128xf32>
      %38 = vector.multi_reduction <maximumf>, %37, %cst_29 [1] : vector<128x256xf32> to vector<128xf32>
      %39 = vector.shape_cast %38 : vector<128xf32> to vector<128x1xf32>
      %c0_30 = arith.constant 0 : index
      %c0_31 = arith.constant 0 : index
      %40 = vector.load %arg10[%c0_30, %c0_31] : memref<128x256xf32, #tpu.memory_space<vmem>>, vector<128x256xf32>
      %cst_32 = arith.constant dense<0x7F800000> : vector<128xf32>
      %41 = vector.multi_reduction <minimumf>, %40, %cst_32 [1] : vector<128x256xf32> to vector<128xf32>
      %42 = vector.shape_cast %41 : vector<128xf32> to vector<128x1xf32>
      %cst_33 = arith.constant 1.000000e-16 : f32
      %43 = vector.broadcast %cst_33 : f32 to vector<128x1xf32>
      %44 = arith.maximumf %39, %43 : vector<128x1xf32>
      %45 = math.sqrt %44 : vector<128x1xf32>
      %cst_34 = arith.constant 1.000000e-16 : f32
      %46 = vector.broadcast %cst_34 : f32 to vector<128x1xf32>
      %47 = arith.maximumf %42, %46 : vector<128x1xf32>
      %48 = math.sqrt %47 : vector<128x1xf32>
      %49 = arith.subf %45, %48 : vector<128x1xf32>
      %cst_35 = arith.constant 3.000000e-01 : f32
      %50 = vector.broadcast %cst_35 : f32 to vector<128x1xf32>
      %51 = arith.addf %49, %50 : vector<128x1xf32>
      %cst_36 = arith.constant 0.000000e+00 : f32
      %52 = vector.broadcast %cst_36 : f32 to vector<128x1xf32>
      %53 = arith.maximumf %51, %52 : vector<128x1xf32>
      %c0_37 = arith.constant 0 : index
      %c0_38 = arith.constant 0 : index
      %54 = vector.load %arg8[%c0_37, %c0_38] : memref<128x1xf32, #tpu.memory_space<vmem>>, vector<128x1xf32>
      tpu.vector_store %arg8[%c0_37, %c0_38], %53 {strides = array<i32>} : memref<128x1xf32, #tpu.memory_space<vmem>>, vector<128x1xf32>,
    } else {
    }
    return
  }
  func.func @transform_0(%arg0: i32, %arg1: i32) -> (i32, i32) {
    %c0_i32 = arith.constant 0 : i32
    %c0_i32_0 = arith.constant 0 : i32
    return %arg0, %c0_i32 : i32, i32
  }
  func.func @transform_1(%arg0: i32, %arg1: i32) -> (i32, i32) {
    %c0_i32 = arith.constant 0 : i32
    %c0_i32_0 = arith.constant 0 : i32
    return %arg1, %c0_i32 : i32, i32
  }
  func.func @transform_2(%arg0: i32, %arg1: i32) -> (i32, i32) {
    %c0_i32 = arith.constant 0 : i32
    %c0_i32_0 = arith.constant 0 : i32
    return %arg0, %c0_i32 : i32, i32
  }
  func.func @transform_3(%arg0: i32, %arg1: i32) -> (i32, i32) {
    %c0_i32 = arith.constant 0 : i32
    %c0_i32_0 = arith.constant 0 : i32
    return %c0_i32, %arg1 : i32, i32
  }
  func.func @transform_4(%arg0: i32, %arg1: i32) -> (i32, i32) {
    %c0_i32 = arith.constant 0 : i32
    %c0_i32_0 = arith.constant 0 : i32
    return %arg0, %c0_i32 : i32, i32
  }
  func.func @transform_5(%arg0: i32, %arg1: i32) -> (i32, i32) {
    %c0_i32 = arith.constant 0 : i32
    %c0_i32_0 = arith.constant 0 : i32
    return %c0_i32, %arg1 : i32, i32
  }
  func.func @transform_6(%arg0: i32, %arg1: i32) -> (i32, i32) {
    %c0_i32 = arith.constant 0 : i32
    %c0_i32_0 = arith.constant 0 : i32
    return %arg0, %c0_i32 : i32, i32
  }
}

</mosaic_0001>

<llo_original>
// kernel: tpu_custom_call.1
$region0: #{tpu_custom_call.1}
  #allocation0 [shape = 'u32[]', space=smem, size = 0x4, offset = 0x4, fixed_abs, tag = 'smem constant byte address 0x4 - core index']
  #allocation1 [shape = 'u32[144,128]{1,0:T(1,128)}', space=vmem, size = 0x12000, scoped, tag = 'internal scratch']
  #allocation2 [shape = 'f32[128,256]{1,0:T(8,128)}', space=vmem, size = 0x20000, scoped, tag = 'scratch operand']
  #allocation3 [shape = 'f32[128,256]{1,0:T(8,128)}', space=vmem, size = 0x20000, scoped, tag = 'scratch operand']
  %s0 = inlined_call_operand.vmem [shape: bf16[256,128], index: 0, kind: input, shape index: {}]
  %s1 = inlined_call_operand.vmem [shape: bf16[256,128], index: 1, kind: input, shape index: {}]
  %s2 = inlined_call_operand.vmem [shape: f32[256,1], index: 2, kind: input, shape index: {}]
  %s3 = inlined_call_operand.vmem [shape: f32[1,256], index: 3, kind: input, shape index: {}]
  %s4 = inlined_call_operand.vmem [shape: s32[256,1], index: 4, kind: input, shape index: {}]
  %s5 = inlined_call_operand.vmem [shape: s32[1,256], index: 5, kind: input, shape index: {}]
  %s6 = inlined_call_operand.vmem [shape: f32[256,1], index: 6, kind: output, shape index: {}]
  %s7 = sld [smem:[#allocation0]]
  $region65: #{tpu_custom_call.1} parent=0
    _
  %s9 = ssub.s32 1, %s7
  %s10 = scalar_select 0, %s9, %s7
  loop: start=0, step=1, limit=4
  $region2: #{tpu_custom_call.1} parent=0 // loop_pre_header
    _
  $region3: #{tpu_custom_call.1} parent=0 // loop_header
    %s12 = sphi 0, %s16
    %p13 = scmp.ge.s32.totalorder %s12, 4
    %s19 = sphi 0, %s31
    %s20 = sphi 0, %s27
    %s21 = sphi 0, %s19
    %s22 = sphi 0, %s20
    %s23 = sphi 0, %s21
    %s24 = sphi 0, %s22
    %s34 = sphi 0, %s36
    %s37 = sphi 0, %s34
    %s38 = sphi 0, %s37
    %s54 = sphi 0, %s38
    %s60 = sphi 0, %s62
    %s63 = sphi 0, %s60
    %s64 = sphi 0, %s63
    %s80 = sphi 0, %s64
    %s86 = sphi 0, %s88
    %s89 = sphi 0, %s86
    %s90 = sphi 0, %s89
    %s106 = sphi 0, %s90
    %s112 = sphi 0, %s114
    %s115 = sphi 0, %s112
    %s116 = sphi 0, %s115
    %s132 = sphi 0, %s116
    %s138 = sphi 0, %s140
    %s141 = sphi 0, %s138
    %s142 = sphi 0, %s141
    %s158 = sphi 0, %s142
    %s164 = sphi 0, %s166
    %s167 = sphi 0, %s164
    %s168 = sphi 0, %s167
    %s184 = sphi 0, %s168
    %s190 = sphi 0, %s192
    %s193 = sphi 0, %s190
    %s194 = sphi 0, %s193
    %s210 = sphi 0, %s194
  $region4: #{tpu_custom_call.1} parent=0 // loop_header_branch
    %15 = sbr.rel (%p13) target = $region8
  $region5: #{tpu_custom_call.1} parent=0 // loop_body
    %s17 = ssub.s32 %s12, 1
    %s18 = ssub.s32 %s12, 2
    %s25 = sadd.s32 1, %s20
    %p26 = scmp.ge.s32.totalorder %s25, 1
    %s27 = scalar_select %p26, 0, %s25
    %s28 = sadd.s32 1, %s19
    %s29 = scalar_select %p26, %s28, %s19
    %p30 = scmp.ge.s32.totalorder %s29, 2
    %s31 = scalar_select %p30, 0, %s29
    %s32 = ssub.s32 %s19, %s31
    %p33 = scmp.eq.s32.totalorder %s32, 0
    %s35 = sadd.s32 %s34, 1
    %s36 = scalar_select %p33, %s34, %s35
    %p39 = pneg %p33
    %p40 = scmp.eq.s32.totalorder %s12, 1
    %p41 = por %p39, %p40
    %p42 = scmp.ne.s32.totalorder %s34, %s37
    %p43 = scmp.eq.s32.totalorder %s12, 0
    %p44 = por %p42, %p43
    %p45 = scmp.ne.s32.totalorder %s34, %s37
    %p46 = scmp.eq.s32.totalorder %s17, 1
    %p47 = por %p45, %p46
    %p48 = scmp.ne.s32.totalorder %s37, %s38
    %p49 = scmp.eq.s32.totalorder %s17, 0
    %p50 = por %p48, %p49
    %p51 = scmp.ne.s32.totalorder %s37, %s38
    %p52 = scmp.eq.s32.totalorder %s18, 1
    %p53 = por %p51, %p52
    %p55 = scmp.ne.s32.totalorder %s38, %s54
    %p56 = scmp.eq.s32.totalorder %s18, 0
    %p57 = por %p55, %p56
    %s58 = ssub.s32 %s20, %s27
    %p59 = scmp.eq.s32.totalorder %s58, 0
    %s61 = sadd.s32 %s60, 1
    %s62 = scalar_select %p59, %s60, %s61
    %p65 = pneg %p59
    %p66 = scmp.eq.s32.totalorder %s12, 1
    %p67 = por %p65, %p66
    %p68 = scmp.ne.s32.totalorder %s60, %s63
    %p69 = scmp.eq.s32.totalorder %s12, 0
    %p70 = por %p68, %p69
    %p71 = scmp.ne.s32.totalorder %s60, %s63
    %p72 = scmp.eq.s32.totalorder %s17, 1
    %p73 = por %p71, %p72
    %p74 = scmp.ne.s32.totalorder %s63, %s64
    %p75 = scmp.eq.s32.totalorder %s17, 0
    %p76 = por %p74, %p75
    %p77 = scmp.ne.s32.totalorder %s63, %s64
    %p78 = scmp.eq.s32.totalorder %s18, 1
    %p79 = por %p77, %p78
    %p81 = scmp.ne.s32.totalorder %s64, %s80
    %p82 = scmp.eq.s32.totalorder %s18, 0
    %p83 = por %p81, %p82
    %s84 = ssub.s32 %s19, %s31
    %p85 = scmp.eq.s32.totalorder %s84, 0
    %s87 = sadd.s32 %s86, 1
    %s88 = scalar_select %p85, %s86, %s87
    %p91 = pneg %p85
    %p92 = scmp.eq.s32.totalorder %s12, 1
    %p93 = por %p91, %p92
    %p94 = scmp.ne.s32.totalorder %s86, %s89
    %p95 = scmp.eq.s32.totalorder %s12, 0
    %p96 = por %p94, %p95
    %p97 = scmp.ne.s32.totalorder %s86, %s89
    %p98 = scmp.eq.s32.totalorder %s17, 1
    %p99 = por %p97, %p98
    %p100 = scmp.ne.s32.totalorder %s89, %s90
    %p101 = scmp.eq.s32.totalorder %s17, 0
    %p102 = por %p100, %p101
    %p103 = scmp.ne.s32.totalorder %s89, %s90
    %p104 = scmp.eq.s32.totalorder %s18, 1
    %p105 = por %p103, %p104
    %p107 = scmp.ne.s32.totalorder %s90, %s106
    %p108 = scmp.eq.s32.totalorder %s18, 0
    %p109 = por %p107, %p108
    %s110 = ssub.s32 %s20, %s27
    %p111 = scmp.eq.s32.totalorder %s110, 0
    %s113 = sadd.s32 %s112, 1
    %s114 = scalar_select %p111, %s112, %s113
    %p117 = pneg %p111
    %p118 = scmp.eq.s32.totalorder %s12, 1
    %p119 = por %p117, %p118
    %p120 = scmp.ne.s32.totalorder %s112, %s115
    %p121 = scmp.eq.s32.totalorder %s12, 0
    %p122 = por %p120, %p121
    %p123 = scmp.ne.s32.totalorder %s112, %s115
    %p124 = scmp.eq.s32.totalorder %s17, 1
    %p125 = por %p123, %p124
    %p126 = scmp.ne.s32.totalorder %s115, %s116
    %p127 = scmp.eq.s32.totalorder %s17, 0
    %p128 = por %p126, %p127
    %p129 = scmp.ne.s32.totalorder %s115, %s116
    %p130 = scmp.eq.s32.totalorder %s18, 1
    %p131 = por %p129, %p130
    %p133 = scmp.ne.s32.totalorder %s116, %s132
    %p134 = scmp.eq.s32.totalorder %s18, 0
    %p135 = por %p133, %p134
    %s136 = ssub.s32 %s19, %s31
    %p137 = scmp.eq.s32.totalorder %s136, 0
    %s139 = sadd.s32 %s138, 1
    %s140 = scalar_select %p137, %s138, %s139
    %p143 = pneg %p137
    %p144 = scmp.eq.s32.totalorder %s12, 1
    %p145 = por %p143, %p144
    %p146 = scmp.ne.s32.totalorder %s138, %s141
    %p147 = scmp.eq.s32.totalorder %s12, 0
    %p148 = por %p146, %p147
    %p149 = scmp.ne.s32.totalorder %s138, %s141
    %p150 = scmp.eq.s32.totalorder %s17, 1
    %p151 = por %p149, %p150
    %p152 = scmp.ne.s32.totalorder %s141, %s142
    %p153 = scmp.eq.s32.totalorder %s17, 0
    %p154 = por %p152, %p153
    %p155 = scmp.ne.s32.totalorder %s141, %s142
    %p156 = scmp.eq.s32.totalorder %s18, 1
    %p157 = por %p155, %p156
    %p159 = scmp.ne.s32.totalorder %s142, %s158
    %p160 = scmp.eq.s32.totalorder %s18, 0
    %p161 = por %p159, %p160
    %s162 = ssub.s32 %s20, %s27
    %p163 = scmp.eq.s32.totalorder %s162, 0
    %s165 = sadd.s32 %s164, 1
    %s166 = scalar_select %p163, %s164, %s165
    %p169 = pneg %p163
    %p170 = scmp.eq.s32.totalorder %s12, 1
    %p171 = por %p169, %p170
    %p172 = scmp.ne.s32.totalorder %s164, %s167
    %p173 = scmp.eq.s32.totalorder %s12, 0
    %p174 = por %p172, %p173
    %p175 = scmp.ne.s32.totalorder %s164, %s167
    %p176 = scmp.eq.s32.totalorder %s17, 1
    %p177 = por %p175, %p176
    %p178 = scmp.ne.s32.totalorder %s167, %s168
    %p179 = scmp.eq.s32.totalorder %s17, 0
    %p180 = por %p178, %p179
    %p181 = scmp.ne.s32.totalorder %s167, %s168
    %p182 = scmp.eq.s32.totalorder %s18, 1
    %p183 = por %p181, %p182
    %p185 = scmp.ne.s32.totalorder %s168, %s184
    %p186 = scmp.eq.s32.totalorder %s18, 0
    %p187 = por %p185, %p186
    %s188 = ssub.s32 %s19, %s31
    %p189 = scmp.eq.s32.totalorder %s188, 0
    %s191 = sadd.s32 %s190, 1
    %s192 = scalar_select %p189, %s190, %s191
    %p195 = pneg %p189
    %p196 = scmp.eq.s32.totalorder %s12, 1
    %p197 = por %p195, %p196
    %p198 = scmp.ne.s32.totalorder %s190, %s193
    %p199 = scmp.eq.s32.totalorder %s12, 0
    %p200 = por %p198, %p199
    %p201 = scmp.ne.s32.totalorder %s190, %s193
    %p202 = scmp.eq.s32.totalorder %s17, 1
    %p203 = por %p201, %p202
    %p204 = scmp.ne.s32.totalorder %s193, %s194
    %p205 = scmp.eq.s32.totalorder %s17, 0
    %p206 = por %p204, %p205
    %p207 = scmp.ne.s32.totalorder %s193, %s194
    %p208 = scmp.eq.s32.totalorder %s18, 1
    %p209 = por %p207, %p208
    %p211 = scmp.ne.s32.totalorder %s194, %s210
    %p212 = scmp.eq.s32.totalorder %s18, 0
    %p213 = por %p211, %p212
    %p214 = scmp.le.s32.totalorder 1, %s12
    %p215 = scmp.lt.s32.totalorder %s12, 3
    %p216 = pnand %p214, %p215
    %p217 = pneg %p216
    // Predicated region
    $region9: #{tpu_custom_call.1} parent=5 // pred_check
      _
    $region10: #{tpu_custom_call.1} parent=5 // pred_check_branch
      %219 = sbr.rel (%p216) target = $region12
    $region11: #{tpu_custom_call.1} parent=5 // pred_region
      %s220 = ssub.s32 %s12, 1
      // Predicated region
      $region13: #{tpu_custom_call.1} parent=11 // pred_check
        %p221 = pneg %p76
      $region14: #{tpu_custom_call.1} parent=11 // pred_check_branch
        %223 = sbr.rel (%p221) target = $region16
      $region15: #{tpu_custom_call.1} parent=11 // pred_region
        %s224 = smul.u32 32, %s22
        %p225 = scmp.lt.s32.totalorder %s224, 31
        %s226 = scalar_select %p225, %s224, 31
        %s227 = smul.addr %s226, 4
        %s228 = scalar_lea.vmem %s1, %s227
        %s229 = smul.u32 32, %s22
      $region16: #{tpu_custom_call.1} parent=11 // pred_fallthru
        _
      // Predicated region
      $region17: #{tpu_custom_call.1} parent=11 // pred_check
        %p230 = pneg %p128
      $region18: #{tpu_custom_call.1} parent=11 // pred_check_branch
        %232 = sbr.rel (%p230) target = $region20
      $region19: #{tpu_custom_call.1} parent=11 // pred_region
        %s233 = smul.u32 2, %s22
        %p234 = scmp.lt.s32.totalorder %s233, 1
        %s235 = scalar_select %p234, %s233, 1
        %s236 = scalar_lea.vmem %s3, %s235
        %s237 = smul.u32 2, %s22
      $region20: #{tpu_custom_call.1} parent=11 // pred_fallthru
        _
      // Predicated region
      $region21: #{tpu_custom_call.1} parent=11 // pred_check
        %p238 = pneg %p180
      $region22: #{tpu_custom_call.1} parent=11 // pred_check_branch
        %240 = sbr.rel (%p238) target = $region24
      $region23: #{tpu_custom_call.1} parent=11 // pred_region
        %s241 = smul.u32 2, %s22
        %p242 = scmp.lt.s32.totalorder %s241, 1
        %s243 = scalar_select %p242, %s241, 1
        %s244 = scalar_lea.vmem %s5, %s243
        %s245 = smul.u32 2, %s22
      $region24: #{tpu_custom_call.1} parent=11 // pred_fallthru
        _
    $region12: #{tpu_custom_call.1} parent=5 // pred_fallthru
      _
    %p246 = scmp.lt.s32.totalorder %s12, 2
    // Predicated region
    $region25: #{tpu_custom_call.1} parent=5 // pred_check
      %p247 = pneg %p246
    $region26: #{tpu_custom_call.1} parent=5 // pred_check_branch
      %249 = sbr.rel (%p247) target = $region28
    $region27: #{tpu_custom_call.1} parent=5 // pred_region
      // Predicated region
      $region29: #{tpu_custom_call.1} parent=27 // pred_check
        %p250 = pneg %p44
      $region30: #{tpu_custom_call.1} parent=27 // pred_check_branch
        %252 = sbr.rel (%p250) target = $region32
      $region31: #{tpu_custom_call.1} parent=27 // pred_region
        %s253 = smul.u32 16, %s19
        %p254 = scmp.lt.s32.totalorder %s253, 31
        %s255 = scalar_select %p254, %s253, 31
        %s256 = smul.addr %s255, 4
        %s257 = scalar_lea.vmem %s0, %s256
        %s258 = smul.u32 16, %s19
      $region32: #{tpu_custom_call.1} parent=27 // pred_fallthru
        _
      // Predicated region
      $region33: #{tpu_custom_call.1} parent=27 // pred_check
        %p259 = pneg %p96
      $region34: #{tpu_custom_call.1} parent=27 // pred_check_branch
        %261 = sbr.rel (%p259) target = $region36
      $region35: #{tpu_custom_call.1} parent=27 // pred_region
        %s262 = smul.u32 16, %s19
        %p263 = scmp.lt.s32.totalorder %s262, 31
        %s264 = scalar_select %p263, %s262, 31
        %s265 = smul.addr %s264, 8
        %s266 = scalar_lea.vmem %s2, %s265
        %s267 = smul.u32 16, %s19
      $region36: #{tpu_custom_call.1} parent=27 // pred_fallthru
        _
      // Predicated region
      $region37: #{tpu_custom_call.1} parent=27 // pred_check
        %p268 = pneg %p148
      $region38: #{tpu_custom_call.1} parent=27 // pred_check_branch
        %270 = sbr.rel (%p268) target = $region40
      $region39: #{tpu_custom_call.1} parent=27 // pred_region
        %s271 = smul.u32 16, %s19
        %p272 = scmp.lt.s32.totalorder %s271, 31
        %s273 = scalar_select %p272, %s271, 31
        %s274 = smul.addr %s273, 8
        %s275 = scalar_lea.vmem %s4, %s274
        %s276 = smul.u32 16, %s19
      $region40: #{tpu_custom_call.1} parent=27 // pred_fallthru
        _
    $region28: #{tpu_custom_call.1} parent=5 // pred_fallthru
      _
    %p277 = scmp.le.s32.totalorder 1, %s12
    %p278 = scmp.lt.s32.totalorder %s12, 3
    %p279 = pnand %p277, %p278
    %p280 = pneg %p279
    // Predicated region
    $region41: #{tpu_custom_call.1} parent=5 // pred_check
      _
    $region42: #{tpu_custom_call.1} parent=5 // pred_check_branch
      %282 = sbr.rel (%p279) target = $region44
    $region43: #{tpu_custom_call.1} parent=5 // pred_region
      %s283 = ssub.s32 %s12, 1
      %s284 = smul.u32 16, %s21
      %p285 = scmp.lt.s32.totalorder %s284, 31
      %s286 = scalar_select %p285, %s284, 31
      %s287 = smul.addr %s286, 4
      %s288 = scalar_lea.vmem %s0, %s287
      %p289 = pneg %p50
      %p290 = pneg %p47
      %s291 = smul.u32 32, %s22
      %p292 = scmp.lt.s32.totalorder %s291, 31
      %s293 = scalar_select %p292, %s291, 31
      %s294 = smul.addr %s293, 4
      %s295 = scalar_lea.vmem %s1, %s294
      %p296 = pneg %p76
      %p297 = pneg %p73
      %s298 = smul.u32 16, %s21
      %p299 = scmp.lt.s32.totalorder %s298, 31
      %s300 = scalar_select %p299, %s298, 31
      %s301 = smul.addr %s300, 8
      %s302 = scalar_lea.vmem %s2, %s301
      %p303 = pneg %p102
      %p304 = pneg %p99
      %s305 = smul.u32 2, %s22
      %p306 = scmp.lt.s32.totalorder %s305, 1
      %s307 = scalar_select %p306, %s305, 1
      %s308 = scalar_lea.vmem %s3, %s307
      %p309 = pneg %p128
      %p310 = pneg %p125
      %s311 = smul.u32 16, %s21
      %p312 = scmp.lt.s32.totalorder %s311, 31
      %s313 = scalar_select %p312, %s311, 31
      %s314 = smul.addr %s313, 8
      %s315 = scalar_lea.vmem %s4, %s314
      %p316 = pneg %p154
      %p317 = pneg %p151
      %s318 = smul.u32 2, %s22
      %p319 = scmp.lt.s32.totalorder %s318, 1
      %s320 = scalar_select %p319, %s318, 1
      %s321 = scalar_lea.vmem %s5, %s320
      %p322 = pneg %p180
      %p323 = pneg %p177
      %p324 = pneg %p206
      %p325 = pneg %p203
      %s326 = smul.u32 16, %s21
      %p327 = scmp.lt.s32.totalorder %s326, 31
      %s328 = scalar_select %p327, %s326, 31
      %s329 = smul.addr %s328, 8
      %s330 = scalar_lea.vmem %s6, %s329
      %s331 = smul.u32 16, %s21
      %p332 = scmp.lt.s32.totalorder %s331, 31
      %s333 = scalar_select %p332, %s331, 31
      %s334 = smul.addr %s333, 4
      %s335 = scalar_lea.vmem %s0, %s334
      %s336 = smul.u32 16, %s21
      %s337 = smul.u32 32, %s22
      %p338 = scmp.lt.s32.totalorder %s337, 31
      %s339 = scalar_select %p338, %s337, 31
      %s340 = smul.addr %s339, 4
      %s341 = scalar_lea.vmem %s1, %s340
      %s342 = smul.u32 32, %s22
      %s343 = smul.u32 16, %s21
      %p344 = scmp.lt.s32.totalorder %s343, 31
      %s345 = scalar_select %p344, %s343, 31
      %s346 = smul.addr %s345, 8
      %s347 = scalar_lea.vmem %s2, %s346
      %s348 = smul.u32 16, %s21
      %s349 = smul.u32 2, %s22
      %p350 = scmp.lt.s32.totalorder %s349, 1
      %s351 = scalar_select %p350, %s349, 1
      %s352 = scalar_lea.vmem %s3, %s351
      %s353 = smul.u32 2, %s22
      %s354 = smul.u32 16, %s21
      %p355 = scmp.lt.s32.totalorder %s354, 31
      %s356 = scalar_select %p355, %s354, 31
      %s357 = smul.addr %s356, 8
      %s358 = scalar_lea.vmem %s4, %s357
      %s359 = smul.u32 16, %s21
      %s360 = smul.u32 2, %s22
      %p361 = scmp.lt.s32.totalorder %s360, 1
      %s362 = scalar_select %p361, %s360, 1
      %s363 = scalar_lea.vmem %s5, %s362
      %s364 = smul.u32 2, %s22
      %s365 = smul.u32 16, %s21
      %p366 = scmp.lt.s32.totalorder %s365, 31
      %s367 = scalar_select %p366, %s365, 31
      %s368 = smul.addr %s367, 8
      %s369 = scalar_lea.vmem %s6, %s368
      %s370 = smul.u32 16, %s21
      %p372 = scmp.eq.s32.totalorder %s22, 0
      // Predicated region
      $region45: #{tpu_custom_call.1} parent=43 // pred_check
        %p373 = pneg %p372
      $region46: #{tpu_custom_call.1} parent=43 // pred_check_branch
        %375 = sbr.rel (%p373) target = $region48
      $region47: #{tpu_custom_call.1} parent=43 // pred_region
        %376 = vst [vmem:[#allocation2] sm:$0xff] -inf
        %377 = vst [vmem:[#allocation2 + $0x8] sm:$0xff] -inf
        %378 = vst [vmem:[#allocation2 + $0x10] sm:$0xff] -inf
        %379 = vst [vmem:[#allocation2 + $0x18] sm:$0xff] -inf
        %380 = vst [vmem:[#allocation2 + $0x20] sm:$0xff] -inf
        %381 = vst [vmem:[#allocation2 + $0x28] sm:$0xff] -inf
        %382 = vst [vmem:[#allocation2 + $0x30] sm:$0xff] -inf
        %383 = vst [vmem:[#allocation2 + $0x38] sm:$0xff] -inf
        %384 = vst [vmem:[#allocation2 + $0x40] sm:$0xff] -inf
        %385 = vst [vmem:[#allocation2 + $0x48] sm:$0xff] -inf
        %386 = vst [vmem:[#allocation2 + $0x50] sm:$0xff] -inf
        %387 = vst [vmem:[#allocation2 + $0x58] sm:$0xff] -inf
        %388 = vst [vmem:[#allocation2 + $0x60] sm:$0xff] -inf
        %389 = vst [vmem:[#allocation2 + $0x68] sm:$0xff] -inf
        %390 = vst [vmem:[#allocation2 + $0x70] sm:$0xff] -inf
        %391 = vst [vmem:[#allocation2 + $0x78] sm:$0xff] -inf
        %392 = vst [vmem:[#allocation2 + $0x80] sm:$0xff] -inf
        %393 = vst [vmem:[#allocation2 + $0x88] sm:$0xff] -inf
        %394 = vst [vmem:[#allocation2 + $0x90] sm:$0xff] -inf
        %395 = vst [vmem:[#allocation2 + $0x98] sm:$0xff] -inf
        %396 = vst [vmem:[#allocation2 + $0xa0] sm:$0xff] -inf
        %397 = vst [vmem:[#allocation2 + $0xa8] sm:$0xff] -inf
        %398 = vst [vmem:[#allocation2 + $0xb0] sm:$0xff] -inf
        %399 = vst [vmem:[#allocation2 + $0xb8] sm:$0xff] -inf
        %400 = vst [vmem:[#allocation2 + $0xc0] sm:$0xff] -inf
        %401 = vst [vmem:[#allocation2 + $0xc8] sm:$0xff] -inf
        %402 = vst [vmem:[#allocation2 + $0xd0] sm:$0xff] -inf
        %403 = vst [vmem:[#allocation2 + $0xd8] sm:$0xff] -inf
        %404 = vst [vmem:[#allocation2 + $0xe0] sm:$0xff] -inf
        %405 = vst [vmem:[#allocation2 + $0xe8] sm:$0xff] -inf
        %406 = vst [vmem:[#allocation2 + $0xf0] sm:$0xff] -inf
        %407 = vst [vmem:[#allocation2 + $0xf8] sm:$0xff] -inf
        %408 = vst [vmem:[#allocation3] sm:$0xff] inf
        %409 = vst [vmem:[#allocation3 + $0x8] sm:$0xff] inf
        %410 = vst [vmem:[#allocation3 + $0x10] sm:$0xff] inf
        %411 = vst [vmem:[#allocation3 + $0x18] sm:$0xff] inf
        %412 = vst [vmem:[#allocation3 + $0x20] sm:$0xff] inf
        %413 = vst [vmem:[#allocation3 + $0x28] sm:$0xff] inf
        %414 = vst [vmem:[#allocation3 + $0x30] sm:$0xff] inf
        %415 = vst [vmem:[#allocation3 + $0x38] sm:$0xff] inf
        %416 = vst [vmem:[#allocation3 + $0x40] sm:$0xff] inf
        %417 = vst [vmem:[#allocation3 + $0x48] sm:$0xff] inf
        %418 = vst [vmem:[#allocation3 + $0x50] sm:$0xff] inf
        %419 = vst [vmem:[#allocation3 + $0x58] sm:$0xff] inf
        %420 = vst [vmem:[#allocation3 + $0x60] sm:$0xff] inf
        %421 = vst [vmem:[#allocation3 + $0x68] sm:$0xff] inf
        %422 = vst [vmem:[#allocation3 + $0x70] sm:$0xff] inf
        %423 = vst [vmem:[#allocation3 + $0x78] sm:$0xff] inf
        %424 = vst [vmem:[#allocation3 + $0x80] sm:$0xff] inf
        %425 = vst [vmem:[#allocation3 + $0x88] sm:$0xff] inf
        %426 = vst [vmem:[#allocation3 + $0x90] sm:$0xff] inf
        %427 = vst [vmem:[#allocation3 + $0x98] sm:$0xff] inf
        %428 = vst [vmem:[#allocation3 + $0xa0] sm:$0xff] inf
        %429 = vst [vmem:[#allocation3 + $0xa8] sm:$0xff] inf
        %430 = vst [vmem:[#allocation3 + $0xb0] sm:$0xff] inf
        %431 = vst [vmem:[#allocation3 + $0xb8] sm:$0xff] inf
        %432 = vst [vmem:[#allocation3 + $0xc0] sm:$0xff] inf
        %433 = vst [vmem:[#allocation3 + $0xc8] sm:$0xff] inf
        %434 = vst [vmem:[#allocation3 + $0xd0] sm:$0xff] inf
        %435 = vst [vmem:[#allocation3 + $0xd8] sm:$0xff] inf
        %436 = vst [vmem:[#allocation3 + $0xe0] sm:$0xff] inf
        %437 = vst [vmem:[#allocation3 + $0xe8] sm:$0xff] inf
        %438 = vst [vmem:[#allocation3 + $0xf0] sm:$0xff] inf
        %439 = vst [vmem:[#allocation3 + $0xf8] sm:$0xff] inf
      $region48: #{tpu_custom_call.1} parent=43 // pred_fallthru
        _
      %v440 = vld [vmem:[%s335] sm:$0xf]
      %v441 = vld [vmem:[%s335 + $0x4] sm:$0xf]
      %v442 = vld [vmem:[%s335 + $0x8] sm:$0xf]
      %v443 = vld [vmem:[%s335 + $0xc] sm:$0xf]
      %v444 = vld [vmem:[%s335 + $0x10] sm:$0xf]
      %v445 = vld [vmem:[%s335 + $0x14] sm:$0xf]
      %v446 = vld [vmem:[%s335 + $0x18] sm:$0xf]
      %v447 = vld [vmem:[%s335 + $0x1c] sm:$0xf]
      %v448 = vld [vmem:[%s335 + $0x20] sm:$0xf]
      %v449 = vld [vmem:[%s335 + $0x24] sm:$0xf]
      %v450 = vld [vmem:[%s335 + $0x28] sm:$0xf]
      %v451 = vld [vmem:[%s335 + $0x2c] sm:$0xf]
      %v452 = vld [vmem:[%s335 + $0x30] sm:$0xf]
      %v453 = vld [vmem:[%s335 + $0x34] sm:$0xf]
      %v454 = vld [vmem:[%s335 + $0x38] sm:$0xf]
      %v455 = vld [vmem:[%s335 + $0x3c] sm:$0xf]
      %v456 = vld [vmem:[%s341] sm:$0xf]
      %v457 = vld [vmem:[%s341 + $0x4] sm:$0xf]
      %v458 = vld [vmem:[%s341 + $0x8] sm:$0xf]
      %v459 = vld [vmem:[%s341 + $0xc] sm:$0xf]
      %v460 = vld [vmem:[%s341 + $0x10] sm:$0xf]
      %v461 = vld [vmem:[%s341 + $0x14] sm:$0xf]
      %v462 = vld [vmem:[%s341 + $0x18] sm:$0xf]
      %v463 = vld [vmem:[%s341 + $0x1c] sm:$0xf]
      %v464 = vld [vmem:[%s341 + $0x20] sm:$0xf]
      %v465 = vld [vmem:[%s341 + $0x24] sm:$0xf]
      %v466 = vld [vmem:[%s341 + $0x28] sm:$0xf]
      %v467 = vld [vmem:[%s341 + $0x2c] sm:$0xf]
      %v468 = vld [vmem:[%s341 + $0x30] sm:$0xf]
      %v469 = vld [vmem:[%s341 + $0x34] sm:$0xf]
      %v470 = vld [vmem:[%s341 + $0x38] sm:$0xf]
      %v471 = vld [vmem:[%s341 + $0x3c] sm:$0xf]
      %v472 = vld [vmem:[%s341 + $0x40] sm:$0xf]
      %v473 = vld [vmem:[%s341 + $0x44] sm:$0xf]
      %v474 = vld [vmem:[%s341 + $0x48] sm:$0xf]
      %v475 = vld [vmem:[%s341 + $0x4c] sm:$0xf]
      %v476 = vld [vmem:[%s341 + $0x50] sm:$0xf]
      %v477 = vld [vmem:[%s341 + $0x54] sm:$0xf]
      %v478 = vld [vmem:[%s341 + $0x58] sm:$0xf]
      %v479 = vld [vmem:[%s341 + $0x5c] sm:$0xf]
      %v480 = vld [vmem:[%s341 + $0x60] sm:$0xf]
      %v481 = vld [vmem:[%s341 + $0x64] sm:$0xf]
      %v482 = vld [vmem:[%s341 + $0x68] sm:$0xf]
      %v483 = vld [vmem:[%s341 + $0x6c] sm:$0xf]
      %v484 = vld [vmem:[%s341 + $0x70] sm:$0xf]
      %v485 = vld [vmem:[%s341 + $0x74] sm:$0xf]
      %v486 = vld [vmem:[%s341 + $0x78] sm:$0xf]
      %v487 = vld [vmem:[%s341 + $0x7c] sm:$0xf]
      %v504 = vunpack.c.l.b16 %v440
      %v505 = vunpack.c.l.b16 %v441
      %v506 = vunpack.c.l.b16 %v442
      %v507 = vunpack.c.l.b16 %v443
      %v508 = vunpack.c.l.b16 %v444
      %v509 = vunpack.c.l.b16 %v445
      %v510 = vunpack.c.l.b16 %v446
      %v511 = vunpack.c.l.b16 %v447
      %v512 = vunpack.c.l.b16 %v448
      %v513 = vunpack.c.l.b16 %v449
      %v514 = vunpack.c.l.b16 %v450
      %v515 = vunpack.c.l.b16 %v451
      %v516 = vunpack.c.l.b16 %v452
      %v517 = vunpack.c.l.b16 %v453
      %v518 = vunpack.c.l.b16 %v454
      %v519 = vunpack.c.l.b16 %v455
      %v520 = vpack.c.b16 %v505, %v504
      %v521 = vpack.c.b16 %v507, %v506
      %v522 = vpack.c.b16 %v509, %v508
      %v523 = vpack.c.b16 %v511, %v510
      %v524 = vpack.c.b16 %v513, %v512
      %v525 = vpack.c.b16 %v515, %v514
      %v526 = vpack.c.b16 %v517, %v516
      %v527 = vpack.c.b16 %v519, %v518
      %v568 = vunpack.c.l.b16 %v456
      %v569 = vunpack.c.l.b16 %v457
      %v570 = vunpack.c.l.b16 %v458
      %v571 = vunpack.c.l.b16 %v459
      %v572 = vunpack.c.l.b16 %v460
      %v573 = vunpack.c.l.b16 %v461
      %v574 = vunpack.c.l.b16 %v462
      %v575 = vunpack.c.l.b16 %v463
      %v576 = vunpack.c.l.b16 %v464
      %v577 = vunpack.c.l.b16 %v465
      %v578 = vunpack.c.l.b16 %v466
      %v579 = vunpack.c.l.b16 %v467
      %v580 = vunpack.c.l.b16 %v468
      %v581 = vunpack.c.l.b16 %v469
      %v582 = vunpack.c.l.b16 %v470
      %v583 = vunpack.c.l.b16 %v471
      %v584 = vunpack.c.l.b16 %v472
      %v585 = vunpack.c.l.b16 %v473
      %v586 = vunpack.c.l.b16 %v474
      %v587 = vunpack.c.l.b16 %v475
      %v588 = vunpack.c.l.b16 %v476
      %v589 = vunpack.c.l.b16 %v477
      %v590 = vunpack.c.l.b16 %v478
      %v591 = vunpack.c.l.b16 %v479
      %v592 = vunpack.c.l.b16 %v480
      %v593 = vunpack.c.l.b16 %v481
      %v594 = vunpack.c.l.b16 %v482
      %v595 = vunpack.c.l.b16 %v483
      %v596 = vunpack.c.l.b16 %v484
      %v597 = vunpack.c.l.b16 %v485
      %v598 = vunpack.c.l.b16 %v486
      %v599 = vunpack.c.l.b16 %v487
      %v600 = vpack.c.b16 %v569, %v568
      %v601 = vpack.c.b16 %v571, %v570
      %v602 = vpack.c.b16 %v573, %v572
      %v603 = vpack.c.b16 %v575, %v574
      %v604 = vpack.c.b16 %v577, %v576
      %v605 = vpack.c.b16 %v579, %v578
      %v606 = vpack.c.b16 %v581, %v580
      %v607 = vpack.c.b16 %v583, %v582
      %v608 = vpack.c.b16 %v585, %v584
      %v609 = vpack.c.b16 %v587, %v586
      %v610 = vpack.c.b16 %v589, %v588
      %v611 = vpack.c.b16 %v591, %v590
      %v612 = vpack.c.b16 %v593, %v592
      %v613 = vpack.c.b16 %v595, %v594
      %v614 = vpack.c.b16 %v597, %v596
      %v615 = vpack.c.b16 %v599, %v598
      %632 = vmatprep.subr.bf16.mxu0 0
      %633 = vmatpush1.bf16.xpose.msra.mxu0 %v607
      %634 = vmatprep.subr.bf16.mxu0 0
      %635 = vmatpush1.bf16.xpose.msra.mxu0 %v606
      %636 = vmatprep.subr.bf16.mxu0 0
      %637 = vmatpush1.bf16.xpose.msra.mxu0 %v605
      %638 = vmatprep.subr.bf16.mxu0 0
      %639 = vmatpush1.bf16.xpose.msra.mxu0 %v604
      %640 = vmatprep.subr.bf16.mxu0 0
      %641 = vmatpush1.bf16.xpose.msra.mxu0 %v603
      %642 = vmatprep.subr.bf16.mxu0 0
      %643 = vmatpush1.bf16.xpose.msra.mxu0 %v602
      %644 = vmatprep.subr.bf16.mxu0 0
      %645 = vmatpush1.bf16.xpose.msra.mxu0 %v601
      %646 = vmatprep.subr.bf16.mxu0 0
      %647 = vmatpush1.bf16.xpose.msra.mxu0 %v600
      %648 = vmatprep.subr.bf16.mxu0 0
      %649 = vmatpush2.bf16.xpose.msra.mxu0 %v615
      %650 = vmatprep.subr.bf16.mxu0 0
      %651 = vmatpush2.bf16.xpose.msra.mxu0 %v614
      %652 = vmatprep.subr.bf16.mxu0 0
      %653 = vmatpush2.bf16.xpose.msra.mxu0 %v613
      %654 = vmatprep.subr.bf16.mxu0 0
      %655 = vmatpush2.bf16.xpose.msra.mxu0 %v612
      %656 = vmatprep.subr.bf16.mxu0 0
      %657 = vmatpush2.bf16.xpose.msra.mxu0 %v611
      %658 = vmatprep.subr.bf16.mxu0 0
      %659 = vmatpush2.bf16.xpose.msra.mxu0 %v610
      %660 = vmatprep.subr.bf16.mxu0 0
      %661 = vmatpush2.bf16.xpose.msra.mxu0 %v609
      %662 = vmatprep.subr.bf16.mxu0 0
      %663 = vmatpush2.bf16.xpose.msra.mxu0 %v608
      %664 = vmatprep.mubr.bf16.mxu0 0
      %665 = vmatmul.mubr.bf16.gmra.mxu0 %v520
      %v666 = vpop.f32.mrf.mxu0
      %v667 = vadd.f32 0.0, %v666
      %v668 = vpop.f32.mrf.mxu0
      %v669 = vadd.f32 0.0, %v668
      %v670 = vpop.f32.mrf.mxu0
      %v671 = vadd.f32 0.0, %v670
      %v672 = vpop.f32.mrf.mxu0
      %v673 = vadd.f32 0.0, %v672
      %674 = vmatprep.mubr.bf16.mxu0 0
      %675 = vmatmul.mubr.bf16.gmra.mxu0 %v521
      %v676 = vpop.f32.mrf.mxu0
      %v677 = vadd.f32 0.0, %v676
      %v678 = vpop.f32.mrf.mxu0
      %v679 = vadd.f32 0.0, %v678
      %v680 = vpop.f32.mrf.mxu0
      %v681 = vadd.f32 0.0, %v680
      %v682 = vpop.f32.mrf.mxu0
      %v683 = vadd.f32 0.0, %v682
      %684 = vmatprep.mubr.bf16.mxu0 0
      %685 = vmatmul.mubr.bf16.gmra.mxu0 %v522
      %v686 = vpop.f32.mrf.mxu0
      %v687 = vadd.f32 0.0, %v686
      %v688 = vpop.f32.mrf.mxu0
      %v689 = vadd.f32 0.0, %v688
      %v690 = vpop.f32.mrf.mxu0
      %v691 = vadd.f32 0.0, %v690
      %v692 = vpop.f32.mrf.mxu0
      %v693 = vadd.f32 0.0, %v692
      %694 = vmatprep.mubr.bf16.mxu0 0
      %695 = vmatmul.mubr.bf16.gmra.mxu0 %v523
      %v696 = vpop.f32.mrf.mxu0
      %v697 = vadd.f32 0.0, %v696
      %v698 = vpop.f32.mrf.mxu0
      %v699 = vadd.f32 0.0, %v698
      %v700 = vpop.f32.mrf.mxu0
      %v701 = vadd.f32 0.0, %v700
      %v702 = vpop.f32.mrf.mxu0
      %v703 = vadd.f32 0.0, %v702
      %704 = vmatprep.mubr.bf16.mxu0 0
      %705 = vmatmul.mubr.bf16.gmra.mxu0 %v524
      %v706 = vpop.f32.mrf.mxu0
      %v707 = vadd.f32 0.0, %v706
      %v708 = vpop.f32.mrf.mxu0
      %v709 = vadd.f32 0.0, %v708
      %v710 = vpop.f32.mrf.mxu0
      %v711 = vadd.f32 0.0, %v710
      %v712 = vpop.f32.mrf.mxu0
      %v713 = vadd.f32 0.0, %v712
      %714 = vmatprep.mubr.bf16.mxu0 0
      %715 = vmatmul.mubr.bf16.gmra.mxu0 %v525
      %v716 = vpop.f32.mrf.mxu0
      %v717 = vadd.f32 0.0, %v716
      %v718 = vpop.f32.mrf.mxu0
      %v719 = vadd.f32 0.0, %v718
      %v720 = vpop.f32.mrf.mxu0
      %v721 = vadd.f32 0.0, %v720
      %v722 = vpop.f32.mrf.mxu0
      %v723 = vadd.f32 0.0, %v722
      %724 = vmatprep.mubr.bf16.mxu0 0
      %725 = vmatmul.mubr.bf16.gmra.mxu0 %v526
      %v726 = vpop.f32.mrf.mxu0
      %v727 = vadd.f32 0.0, %v726
      %v728 = vpop.f32.mrf.mxu0
      %v729 = vadd.f32 0.0, %v728
      %v730 = vpop.f32.mrf.mxu0
      %v731 = vadd.f32 0.0, %v730
      %v732 = vpop.f32.mrf.mxu0
      %v733 = vadd.f32 0.0, %v732
      %734 = vmatprep.mubr.bf16.mxu0 0
      %735 = vmatmul.mubr.bf16.gmra.mxu0 %v527
      %v736 = vpop.f32.mrf.mxu0
      %v737 = vadd.f32 0.0, %v736
      %v738 = vpop.f32.mrf.mxu0
      %v739 = vadd.f32 0.0, %v738
      %v740 = vpop.f32.mrf.mxu0
      %v741 = vadd.f32 0.0, %v740
      %v742 = vpop.f32.mrf.mxu0
      %v743 = vadd.f32 0.0, %v742
      %744 = vdwg.mxu0
      %v745 = vld [vmem:[%s347] sm:$0xff]
      %v746 = vld [vmem:[%s347 + $0x8] sm:$0xff]
      %v747 = vld [vmem:[%s347 + $0x10] sm:$0xff]
      %v748 = vld [vmem:[%s347 + $0x18] sm:$0xff]
      %v749 = vld [vmem:[%s347 + $0x20] sm:$0xff]
      %v750 = vld [vmem:[%s347 + $0x28] sm:$0xff]
      %v751 = vld [vmem:[%s347 + $0x30] sm:$0xff]
      %v752 = vld [vmem:[%s347 + $0x38] sm:$0xff]
      %v753 = vld [vmem:[%s347 + $0x40] sm:$0xff]
      %v754 = vld [vmem:[%s347 + $0x48] sm:$0xff]
      %v755 = vld [vmem:[%s347 + $0x50] sm:$0xff]
      %v756 = vld [vmem:[%s347 + $0x58] sm:$0xff]
      %v757 = vld [vmem:[%s347 + $0x60] sm:$0xff]
      %v758 = vld [vmem:[%s347 + $0x68] sm:$0xff]
      %v759 = vld [vmem:[%s347 + $0x70] sm:$0xff]
      %v760 = vld [vmem:[%s347 + $0x78] sm:$0xff]
      %v761 = vld [vmem:[%s352] sm:$0x3]
      %763 = vset.pattern.permute.xlu0 0
      %764 = vperm.xlu0 %763, %v745
      %v765 = vpop.permute.xlu0 %764
      %768 = vset.pattern.permute.xlu0 0
      %769 = vperm.xlu0 %768, %v746
      %v770 = vpop.permute.xlu0 %769
      %773 = vset.pattern.permute.xlu0 0
      %774 = vperm.xlu0 %773, %v747
      %v775 = vpop.permute.xlu0 %774
      %778 = vset.pattern.permute.xlu0 0
      %779 = vperm.xlu0 %778, %v748
      %v780 = vpop.permute.xlu0 %779
      %783 = vset.pattern.permute.xlu0 0
      %784 = vperm.xlu0 %783, %v749
      %v785 = vpop.permute.xlu0 %784
      %788 = vset.pattern.permute.xlu0 0
      %789 = vperm.xlu0 %788, %v750
      %v790 = vpop.permute.xlu0 %789
      %793 = vset.pattern.permute.xlu0 0
      %794 = vperm.xlu0 %793, %v751
      %v795 = vpop.permute.xlu0 %794
      %798 = vset.pattern.permute.xlu0 0
      %799 = vperm.xlu0 %798, %v752
      %v800 = vpop.permute.xlu0 %799
      %803 = vset.pattern.permute.xlu0 0
      %804 = vperm.xlu0 %803, %v753
      %v805 = vpop.permute.xlu0 %804
      %808 = vset.pattern.permute.xlu0 0
      %809 = vperm.xlu0 %808, %v754
      %v810 = vpop.permute.xlu0 %809
      %813 = vset.pattern.permute.xlu0 0
      %814 = vperm.xlu0 %813, %v755
      %v815 = vpop.permute.xlu0 %814
      %818 = vset.pattern.permute.xlu0 0
      %819 = vperm.xlu0 %818, %v756
      %v820 = vpop.permute.xlu0 %819
      %823 = vset.pattern.permute.xlu0 0
      %824 = vperm.xlu0 %823, %v757
      %v825 = vpop.permute.xlu0 %824
      %828 = vset.pattern.permute.xlu0 0
      %829 = vperm.xlu0 %828, %v758
      %v830 = vpop.permute.xlu0 %829
      %833 = vset.pattern.permute.xlu0 0
      %834 = vperm.xlu0 %833, %v759
      %v835 = vpop.permute.xlu0 %834
      %838 = vset.pattern.permute.xlu0 0
      %839 = vperm.xlu0 %838, %v760
      %v840 = vpop.permute.xlu0 %839
      %v843 = vlaneseq
      %v844 = vshrl.u32 %v843, 7
      %v845 = vsub.s32 0, %v844
      %v846 = vrot.slane %v761, %v845
      %v847 = vlaneseq
      %v848 = vshrl.u32 %v847, 7
      %v849 = vsub.s32 1, %v848
      %v850 = vrot.slane %v761, %v849
      %v853 = vadd.f32 %v765, %v846
      %v854 = vadd.f32 %v765, %v850
      %v855 = vadd.f32 %v770, %v846
      %v856 = vadd.f32 %v770, %v850
      %v857 = vadd.f32 %v775, %v846
      %v858 = vadd.f32 %v775, %v850
      %v859 = vadd.f32 %v780, %v846
      %v860 = vadd.f32 %v780, %v850
      %v861 = vadd.f32 %v785, %v846
      %v862 = vadd.f32 %v785, %v850
      %v863 = vadd.f32 %v790, %v846
      %v864 = vadd.f32 %v790, %v850
      %v865 = vadd.f32 %v795, %v846
      %v866 = vadd.f32 %v795, %v850
      %v867 = vadd.f32 %v800, %v846
      %v868 = vadd.f32 %v800, %v850
      %v869 = vadd.f32 %v805, %v846
      %v870 = vadd.f32 %v805, %v850
      %v871 = vadd.f32 %v810, %v846
      %v872 = vadd.f32 %v810, %v850
      %v873 = vadd.f32 %v815, %v846
      %v874 = vadd.f32 %v815, %v850
      %v875 = vadd.f32 %v820, %v846
      %v876 = vadd.f32 %v820, %v850
      %v877 = vadd.f32 %v825, %v846
      %v878 = vadd.f32 %v825, %v850
      %v879 = vadd.f32 %v830, %v846
      %v880 = vadd.f32 %v830, %v850
      %v881 = vadd.f32 %v835, %v846
      %v882 = vadd.f32 %v835, %v850
      %v883 = vadd.f32 %v840, %v846
      %v884 = vadd.f32 %v840, %v850
      %v885 = vmul.f32 %v667, 2.0
      %v886 = vmul.f32 %v669, 2.0
      %v887 = vmul.f32 %v671, 2.0
      %v888 = vmul.f32 %v673, 2.0
      %v889 = vmul.f32 %v677, 2.0
      %v890 = vmul.f32 %v679, 2.0
      %v891 = vmul.f32 %v681, 2.0
      %v892 = vmul.f32 %v683, 2.0
      %v893 = vmul.f32 %v687, 2.0
      %v894 = vmul.f32 %v689, 2.0
      %v895 = vmul.f32 %v691, 2.0
      %v896 = vmul.f32 %v693, 2.0
      %v897 = vmul.f32 %v697, 2.0
      %v898 = vmul.f32 %v699, 2.0
      %v899 = vmul.f32 %v701, 2.0
      %v900 = vmul.f32 %v703, 2.0
      %v901 = vmul.f32 %v707, 2.0
      %v902 = vmul.f32 %v709, 2.0
      %v903 = vmul.f32 %v711, 2.0
      %v904 = vmul.f32 %v713, 2.0
      %v905 = vmul.f32 %v717, 2.0
      %v906 = vmul.f32 %v719, 2.0
      %v907 = vmul.f32 %v721, 2.0
      %v908 = vmul.f32 %v723, 2.0
      %v909 = vmul.f32 %v727, 2.0
      %v910 = vmul.f32 %v729, 2.0
      %v911 = vmul.f32 %v731, 2.0
      %v912 = vmul.f32 %v733, 2.0
      %v913 = vmul.f32 %v737, 2.0
      %v914 = vmul.f32 %v739, 2.0
      %v915 = vmul.f32 %v741, 2.0
      %v916 = vmul.f32 %v743, 2.0
      %v917 = vsub.f32 %v853, %v885
      %v918 = vsub.f32 %v854, %v886
      %v919 = vsub.f32 %v855, %v887
      %v920 = vsub.f32 %v856, %v888
      %v921 = vsub.f32 %v857, %v889
      %v922 = vsub.f32 %v858, %v890
      %v923 = vsub.f32 %v859, %v891
      %v924 = vsub.f32 %v860, %v892
      %v925 = vsub.f32 %v861, %v893
      %v926 = vsub.f32 %v862, %v894
      %v927 = vsub.f32 %v863, %v895
      %v928 = vsub.f32 %v864, %v896
      %v929 = vsub.f32 %v865, %v897
      %v930 = vsub.f32 %v866, %v898
      %v931 = vsub.f32 %v867, %v899
      %v932 = vsub.f32 %v868, %v900
      %v933 = vsub.f32 %v869, %v901
      %v934 = vsub.f32 %v870, %v902
      %v935 = vsub.f32 %v871, %v903
      %v936 = vsub.f32 %v872, %v904
      %v937 = vsub.f32 %v873, %v905
      %v938 = vsub.f32 %v874, %v906
      %v939 = vsub.f32 %v875, %v907
      %v940 = vsub.f32 %v876, %v908
      %v941 = vsub.f32 %v877, %v909
      %v942 = vsub.f32 %v878, %v910
      %v943 = vsub.f32 %v879, %v911
      %v944 = vsub.f32 %v880, %v912
      %v945 = vsub.f32 %v881, %v913
      %v946 = vsub.f32 %v882, %v914
      %v947 = vsub.f32 %v883, %v915
      %v948 = vsub.f32 %v884, %v916
      %v949 = vld [vmem:[%s358] sm:$0xff]
      %v950 = vld [vmem:[%s358 + $0x8] sm:$0xff]
      %v951 = vld [vmem:[%s358 + $0x10] sm:$0xff]
      %v952 = vld [vmem:[%s358 + $0x18] sm:$0xff]
      %v953 = vld [vmem:[%s358 + $0x20] sm:$0xff]
      %v954 = vld [vmem:[%s358 + $0x28] sm:$0xff]
      %v955 = vld [vmem:[%s358 + $0x30] sm:$0xff]
      %v956 = vld [vmem:[%s358 + $0x38] sm:$0xff]
      %v957 = vld [vmem:[%s358 + $0x40] sm:$0xff]
      %v958 = vld [vmem:[%s358 + $0x48] sm:$0xff]
      %v959 = vld [vmem:[%s358 + $0x50] sm:$0xff]
      %v960 = vld [vmem:[%s358 + $0x58] sm:$0xff]
      %v961 = vld [vmem:[%s358 + $0x60] sm:$0xff]
      %v962 = vld [vmem:[%s358 + $0x68] sm:$0xff]
      %v963 = vld [vmem:[%s358 + $0x70] sm:$0xff]
      %v964 = vld [vmem:[%s358 + $0x78] sm:$0xff]
      %v965 = vld [vmem:[%s363] sm:$0x3]
      %966 = vset.pattern.permute.xlu0 0
      %967 = vperm.xlu0 %966, %v949
      %v968 = vpop.permute.xlu0 %967
      %969 = vset.pattern.permute.xlu0 0
      %970 = vperm.xlu0 %969, %v950
      %v971 = vpop.permute.xlu0 %970
      %972 = vset.pattern.permute.xlu0 0
      %973 = vperm.xlu0 %972, %v951
      %v974 = vpop.permute.xlu0 %973
      %975 = vset.pattern.permute.xlu0 0
      %976 = vperm.xlu0 %975, %v952
      %v977 = vpop.permute.xlu0 %976
      %978 = vset.pattern.permute.xlu0 0
      %979 = vperm.xlu0 %978, %v953
      %v980 = vpop.permute.xlu0 %979
      %981 = vset.pattern.permute.xlu0 0
      %982 = vperm.xlu0 %981, %v954
      %v983 = vpop.permute.xlu0 %982
      %984 = vset.pattern.permute.xlu0 0
      %985 = vperm.xlu0 %984, %v955
      %v986 = vpop.permute.xlu0 %985
      %987 = vset.pattern.permute.xlu0 0
      %988 = vperm.xlu0 %987, %v956
      %v989 = vpop.permute.xlu0 %988
      %990 = vset.pattern.permute.xlu0 0
      %991 = vperm.xlu0 %990, %v957
      %v992 = vpop.permute.xlu0 %991
      %993 = vset.pattern.permute.xlu0 0
      %994 = vperm.xlu0 %993, %v958
      %v995 = vpop.permute.xlu0 %994
      %996 = vset.pattern.permute.xlu0 0
      %997 = vperm.xlu0 %996, %v959
      %v998 = vpop.permute.xlu0 %997
      %999 = vset.pattern.permute.xlu0 0
      %1000 = vperm.xlu0 %999, %v960
      %v1001 = vpop.permute.xlu0 %1000
      %1002 = vset.pattern.permute.xlu0 0
      %1003 = vperm.xlu0 %1002, %v961
      %v1004 = vpop.permute.xlu0 %1003
      %1005 = vset.pattern.permute.xlu0 0
      %1006 = vperm.xlu0 %1005, %v962
      %v1007 = vpop.permute.xlu0 %1006
      %1008 = vset.pattern.permute.xlu0 0
      %1009 = vperm.xlu0 %1008, %v963
      %v1010 = vpop.permute.xlu0 %1009
      %1011 = vset.pattern.permute.xlu0 0
      %1012 = vperm.xlu0 %1011, %v964
      %v1013 = vpop.permute.xlu0 %1012
      %v1014 = vlaneseq
      %v1015 = vshrl.u32 %v1014, 7
      %v1016 = vsub.s32 0, %v1015
      %v1017 = vrot.slane %v965, %v1016
      %v1018 = vlaneseq
      %v1019 = vshrl.u32 %v1018, 7
      %v1020 = vsub.s32 1, %v1019
      %v1021 = vrot.slane %v965, %v1020
      %vm1022 = vcmp.eq.s32.totalorder %v968, %v1017
      %vm1023 = vcmp.eq.s32.totalorder %v968, %v1021
      %vm1024 = vcmp.eq.s32.totalorder %v971, %v1017
      %vm1025 = vcmp.eq.s32.totalorder %v971, %v1021
      %vm1026 = vcmp.eq.s32.totalorder %v974, %v1017
      %vm1027 = vcmp.eq.s32.totalorder %v974, %v1021
      %vm1028 = vcmp.eq.s32.totalorder %v977, %v1017
      %vm1029 = vcmp.eq.s32.totalorder %v977, %v1021
      %vm1030 = vcmp.eq.s32.totalorder %v980, %v1017
      %vm1031 = vcmp.eq.s32.totalorder %v980, %v1021
      %vm1032 = vcmp.eq.s32.totalorder %v983, %v1017
      %vm1033 = vcmp.eq.s32.totalorder %v983, %v1021
      %vm1034 = vcmp.eq.s32.totalorder %v986, %v1017
      %vm1035 = vcmp.eq.s32.totalorder %v986, %v1021
      %vm1036 = vcmp.eq.s32.totalorder %v989, %v1017
      %vm1037 = vcmp.eq.s32.totalorder %v989, %v1021
      %vm1038 = vcmp.eq.s32.totalorder %v992, %v1017
      %vm1039 = vcmp.eq.s32.totalorder %v992, %v1021
      %vm1040 = vcmp.eq.s32.totalorder %v995, %v1017
      %vm1041 = vcmp.eq.s32.totalorder %v995, %v1021
      %vm1042 = vcmp.eq.s32.totalorder %v998, %v1017
      %vm1043 = vcmp.eq.s32.totalorder %v998, %v1021
      %vm1044 = vcmp.eq.s32.totalorder %v1001, %v1017
      %vm1045 = vcmp.eq.s32.totalorder %v1001, %v1021
      %vm1046 = vcmp.eq.s32.totalorder %v1004, %v1017
      %vm1047 = vcmp.eq.s32.totalorder %v1004, %v1021
      %vm1048 = vcmp.eq.s32.totalorder %v1007, %v1017
      %vm1049 = vcmp.eq.s32.totalorder %v1007, %v1021
      %vm1050 = vcmp.eq.s32.totalorder %v1010, %v1017
      %vm1051 = vcmp.eq.s32.totalorder %v1010, %v1021
      %vm1052 = vcmp.eq.s32.totalorder %v1013, %v1017
      %vm1053 = vcmp.eq.s32.totalorder %v1013, %v1021
      %vm1054 = vmxor %vm1022, 1
      %vm1055 = vmxor %vm1023, 1
      %vm1056 = vmxor %vm1024, 1
      %vm1057 = vmxor %vm1025, 1
      %vm1058 = vmxor %vm1026, 1
      %vm1059 = vmxor %vm1027, 1
      %vm1060 = vmxor %vm1028, 1
      %vm1061 = vmxor %vm1029, 1
      %vm1062 = vmxor %vm1030, 1
      %vm1063 = vmxor %vm1031, 1
      %vm1064 = vmxor %vm1032, 1
      %vm1065 = vmxor %vm1033, 1
      %vm1066 = vmxor %vm1034, 1
      %vm1067 = vmxor %vm1035, 1
      %vm1068 = vmxor %vm1036, 1
      %vm1069 = vmxor %vm1037, 1
      %vm1070 = vmxor %vm1038, 1
      %vm1071 = vmxor %vm1039, 1
      %vm1072 = vmxor %vm1040, 1
      %vm1073 = vmxor %vm1041, 1
      %vm1074 = vmxor %vm1042, 1
      %vm1075 = vmxor %vm1043, 1
      %vm1076 = vmxor %vm1044, 1
      %vm1077 = vmxor %vm1045, 1
      %vm1078 = vmxor %vm1046, 1
      %vm1079 = vmxor %vm1047, 1
      %vm1080 = vmxor %vm1048, 1
      %vm1081 = vmxor %vm1049, 1
      %vm1082 = vmxor %vm1050, 1
      %vm1083 = vmxor %vm1051, 1
      %vm1084 = vmxor %vm1052, 1
      %vm1085 = vmxor %vm1053, 1
      %vm1086 = vcmp.ge.s32.totalorder %v965, 0
      %v1087 = vsel %vm1086, 1, 0
      %v1088 = vlaneseq
      %v1089 = vshrl.u32 %v1088, 7
      %v1090 = vsub.s32 0, %v1089
      %v1091 = vrot.slane %v1087, %v1090
      %v1092 = vlaneseq
      %v1093 = vshrl.u32 %v1092, 7
      %v1094 = vsub.s32 1, %v1093
      %v1095 = vrot.slane %v1087, %v1094
      %vm1096 = vcmp.eq.s32.totalorder %v1091, 1
      %vm1097 = vcmp.eq.s32.totalorder %v1095, 1
      %vm1098 = vmand %vm1054, %vm1096
      %vm1099 = vmand %vm1055, %vm1097
      %vm1100 = vmand %vm1056, %vm1096
      %vm1101 = vmand %vm1057, %vm1097
      %vm1102 = vmand %vm1058, %vm1096
      %vm1103 = vmand %vm1059, %vm1097
      %vm1104 = vmand %vm1060, %vm1096
      %vm1105 = vmand %vm1061, %vm1097
      %vm1106 = vmand %vm1062, %vm1096
      %vm1107 = vmand %vm1063, %vm1097
      %vm1108 = vmand %vm1064, %vm1096
      %vm1109 = vmand %vm1065, %vm1097
      %vm1110 = vmand %vm1066, %vm1096
      %vm1111 = vmand %vm1067, %vm1097
      %vm1112 = vmand %vm1068, %vm1096
      %vm1113 = vmand %vm1069, %vm1097
      %vm1114 = vmand %vm1070, %vm1096
      %vm1115 = vmand %vm1071, %vm1097
      %vm1116 = vmand %vm1072, %vm1096
      %vm1117 = vmand %vm1073, %vm1097
      %vm1118 = vmand %vm1074, %vm1096
      %vm1119 = vmand %vm1075, %vm1097
      %vm1120 = vmand %vm1076, %vm1096
      %vm1121 = vmand %vm1077, %vm1097
      %vm1122 = vmand %vm1078, %vm1096
      %vm1123 = vmand %vm1079, %vm1097
      %vm1124 = vmand %vm1080, %vm1096
      %vm1125 = vmand %vm1081, %vm1097
      %vm1126 = vmand %vm1082, %vm1096
      %vm1127 = vmand %vm1083, %vm1097
      %vm1128 = vmand %vm1084, %vm1096
      %vm1129 = vmand %vm1085, %vm1097
      %v1130 = vld [vmem:[#allocation2] sm:$0xff]
      %v1131 = vld [vmem:[#allocation2 + $0x8] sm:$0xff]
      %v1132 = vld [vmem:[#allocation2 + $0x10] sm:$0xff]
      %v1133 = vld [vmem:[#allocation2 + $0x18] sm:$0xff]
      %v1134 = vld [vmem:[#allocation2 + $0x20] sm:$0xff]
      %v1135 = vld [vmem:[#allocation2 + $0x28] sm:$0xff]
      %v1136 = vld [vmem:[#allocation2 + $0x30] sm:$0xff]
      %v1137 = vld [vmem:[#allocation2 + $0x38] sm:$0xff]
      %v1138 = vld [vmem:[#allocation2 + $0x40] sm:$0xff]
      %v1139 = vld [vmem:[#allocation2 + $0x48] sm:$0xff]
      %v1140 = vld [vmem:[#allocation2 + $0x50] sm:$0xff]
      %v1141 = vld [vmem:[#allocation2 + $0x58] sm:$0xff]
      %v1142 = vld [vmem:[#allocation2 + $0x60] sm:$0xff]
      %v1143 = vld [vmem:[#allocation2 + $0x68] sm:$0xff]
      %v1144 = vld [vmem:[#allocation2 + $0x70] sm:$0xff]
      %v1145 = vld [vmem:[#allocation2 + $0x78] sm:$0xff]
      %v1146 = vld [vmem:[#allocation2 + $0x80] sm:$0xff]
      %v1147 = vld [vmem:[#allocation2 + $0x88] sm:$0xff]
      %v1148 = vld [vmem:[#allocation2 + $0x90] sm:$0xff]
      %v1149 = vld [vmem:[#allocation2 + $0x98] sm:$0xff]
      %v1150 = vld [vmem:[#allocation2 + $0xa0] sm:$0xff]
      %v1151 = vld [vmem:[#allocation2 + $0xa8] sm:$0xff]
      %v1152 = vld [vmem:[#allocation2 + $0xb0] sm:$0xff]
      %v1153 = vld [vmem:[#allocation2 + $0xb8] sm:$0xff]
      %v1154 = vld [vmem:[#allocation2 + $0xc0] sm:$0xff]
      %v1155 = vld [vmem:[#allocation2 + $0xc8] sm:$0xff]
      %v1156 = vld [vmem:[#allocation2 + $0xd0] sm:$0xff]
      %v1157 = vld [vmem:[#allocation2 + $0xd8] sm:$0xff]
      %v1158 = vld [vmem:[#allocation2 + $0xe0] sm:$0xff]
      %v1159 = vld [vmem:[#allocation2 + $0xe8] sm:$0xff]
      %v1160 = vld [vmem:[#allocation2 + $0xf0] sm:$0xff]
      %v1161 = vld [vmem:[#allocation2 + $0xf8] sm:$0xff]
      %v1162 = vsel %vm1022, %v917, -inf
      %v1163 = vsel %vm1023, %v918, -inf
      %v1164 = vsel %vm1024, %v919, -inf
      %v1165 = vsel %vm1025, %v920, -inf
      %v1166 = vsel %vm1026, %v921, -inf
      %v1167 = vsel %vm1027, %v922, -inf
      %v1168 = vsel %vm1028, %v923, -inf
      %v1169 = vsel %vm1029, %v924, -inf
      %v1170 = vsel %vm1030, %v925, -inf
      %v1171 = vsel %vm1031, %v926, -inf
      %v1172 = vsel %vm1032, %v927, -inf
      %v1173 = vsel %vm1033, %v928, -inf
      %v1174 = vsel %vm1034, %v929, -inf
      %v1175 = vsel %vm1035, %v930, -inf
      %v1176 = vsel %vm1036, %v931, -inf
      %v1177 = vsel %vm1037, %v932, -inf
      %v1178 = vsel %vm1038, %v933, -inf
      %v1179 = vsel %vm1039, %v934, -inf
      %v1180 = vsel %vm1040, %v935, -inf
      %v1181 = vsel %vm1041, %v936, -inf
      %v1182 = vsel %vm1042, %v937, -inf
      %v1183 = vsel %vm1043, %v938, -inf
      %v1184 = vsel %vm1044, %v939, -inf
      %v1185 = vsel %vm1045, %v940, -inf
      %v1186 = vsel %vm1046, %v941, -inf
      %v1187 = vsel %vm1047, %v942, -inf
      %v1188 = vsel %vm1048, %v943, -inf
      %v1189 = vsel %vm1049, %v944, -inf
      %v1190 = vsel %vm1050, %v945, -inf
      %v1191 = vsel %vm1051, %v946, -inf
      %v1192 = vsel %vm1052, %v947, -inf
      %v1193 = vsel %vm1053, %v948, -inf
      %v1194 = vmax.f32 %v1130, %v1162
      %v1195 = vmax.f32 %v1131, %v1163
      %v1196 = vmax.f32 %v1132, %v1164
      %v1197 = vmax.f32 %v1133, %v1165
      %v1198 = vmax.f32 %v1134, %v1166
      %v1199 = vmax.f32 %v1135, %v1167
      %v1200 = vmax.f32 %v1136, %v1168
      %v1201 = vmax.f32 %v1137, %v1169
      %v1202 = vmax.f32 %v1138, %v1170
      %v1203 = vmax.f32 %v1139, %v1171
      %v1204 = vmax.f32 %v1140, %v1172
      %v1205 = vmax.f32 %v1141, %v1173
      %v1206 = vmax.f32 %v1142, %v1174
      %v1207 = vmax.f32 %v1143, %v1175
      %v1208 = vmax.f32 %v1144, %v1176
      %v1209 = vmax.f32 %v1145, %v1177
      %v1210 = vmax.f32 %v1146, %v1178
      %v1211 = vmax.f32 %v1147, %v1179
      %v1212 = vmax.f32 %v1148, %v1180
      %v1213 = vmax.f32 %v1149, %v1181
      %v1214 = vmax.f32 %v1150, %v1182
      %v1215 = vmax.f32 %v1151, %v1183
      %v1216 = vmax.f32 %v1152, %v1184
      %v1217 = vmax.f32 %v1153, %v1185
      %v1218 = vmax.f32 %v1154, %v1186
      %v1219 = vmax.f32 %v1155, %v1187
      %v1220 = vmax.f32 %v1156, %v1188
      %v1221 = vmax.f32 %v1157, %v1189
      %v1222 = vmax.f32 %v1158, %v1190
      %v1223 = vmax.f32 %v1159, %v1191
      %v1224 = vmax.f32 %v1160, %v1192
      %v1225 = vmax.f32 %v1161, %v1193
      %1226 = vst [vmem:[#allocation2] sm:$0xff] %v1194
      %1227 = vst [vmem:[#allocation2 + $0x8] sm:$0xff] %v1195
      %1228 = vst [vmem:[#allocation2 + $0x10] sm:$0xff] %v1196
      %1229 = vst [vmem:[#allocation2 + $0x18] sm:$0xff] %v1197
      %1230 = vst [vmem:[#allocation2 + $0x20] sm:$0xff] %v1198
      %1231 = vst [vmem:[#allocation2 + $0x28] sm:$0xff] %v1199
      %1232 = vst [vmem:[#allocation2 + $0x30] sm:$0xff] %v1200
      %1233 = vst [vmem:[#allocation2 + $0x38] sm:$0xff] %v1201
      %1234 = vst [vmem:[#allocation2 + $0x40] sm:$0xff] %v1202
      %1235 = vst [vmem:[#allocation2 + $0x48] sm:$0xff] %v1203
      %1236 = vst [vmem:[#allocation2 + $0x50] sm:$0xff] %v1204
      %1237 = vst [vmem:[#allocation2 + $0x58] sm:$0xff] %v1205
      %1238 = vst [vmem:[#allocation2 + $0x60] sm:$0xff] %v1206
      %1239 = vst [vmem:[#allocation2 + $0x68] sm:$0xff] %v1207
      %1240 = vst [vmem:[#allocation2 + $0x70] sm:$0xff] %v1208
      %1241 = vst [vmem:[#allocation2 + $0x78] sm:$0xff] %v1209
      %1242 = vst [vmem:[#allocation2 + $0x80] sm:$0xff] %v1210
      %1243 = vst [vmem:[#allocation2 + $0x88] sm:$0xff] %v1211
      %1244 = vst [vmem:[#allocation2 + $0x90] sm:$0xff] %v1212
      %1245 = vst [vmem:[#allocation2 + $0x98] sm:$0xff] %v1213
      %1246 = vst [vmem:[#allocation2 + $0xa0] sm:$0xff] %v1214
      %1247 = vst [vmem:[#allocation2 + $0xa8] sm:$0xff] %v1215
      %1248 = vst [vmem:[#allocation2 + $0xb0] sm:$0xff] %v1216
      %1249 = vst [vmem:[#allocation2 + $0xb8] sm:$0xff] %v1217
      %1250 = vst [vmem:[#allocation2 + $0xc0] sm:$0xff] %v1218
      %1251 = vst [vmem:[#allocation2 + $0xc8] sm:$0xff] %v1219
      %1252 = vst [vmem:[#allocation2 + $0xd0] sm:$0xff] %v1220
      %1253 = vst [vmem:[#allocation2 + $0xd8] sm:$0xff] %v1221
      %1254 = vst [vmem:[#allocation2 + $0xe0] sm:$0xff] %v1222
      %1255 = vst [vmem:[#allocation2 + $0xe8] sm:$0xff] %v1223
      %1256 = vst [vmem:[#allocation2 + $0xf0] sm:$0xff] %v1224
      %1257 = vst [vmem:[#allocation2 + $0xf8] sm:$0xff] %v1225
      %v1258 = vld [vmem:[#allocation3] sm:$0xff]
      %v1259 = vld [vmem:[#allocation3 + $0x8] sm:$0xff]
      %v1260 = vld [vmem:[#allocation3 + $0x10] sm:$0xff]
      %v1261 = vld [vmem:[#allocation3 + $0x18] sm:$0xff]
      %v1262 = vld [vmem:[#allocation3 + $0x20] sm:$0xff]
      %v1263 = vld [vmem:[#allocation3 + $0x28] sm:$0xff]
      %v1264 = vld [vmem:[#allocation3 + $0x30] sm:$0xff]
      %v1265 = vld [vmem:[#allocation3 + $0x38] sm:$0xff]
      %v1266 = vld [vmem:[#allocation3 + $0x40] sm:$0xff]
      %v1267 = vld [vmem:[#allocation3 + $0x48] sm:$0xff]
      %v1268 = vld [vmem:[#allocation3 + $0x50] sm:$0xff]
      %v1269 = vld [vmem:[#allocation3 + $0x58] sm:$0xff]
      %v1270 = vld [vmem:[#allocation3 + $0x60] sm:$0xff]
      %v1271 = vld [vmem:[#allocation3 + $0x68] sm:$0xff]
      %v1272 = vld [vmem:[#allocation3 + $0x70] sm:$0xff]
      %v1273 = vld [vmem:[#allocation3 + $0x78] sm:$0xff]
      %v1274 = vld [vmem:[#allocation3 + $0x80] sm:$0xff]
      %v1275 = vld [vmem:[#allocation3 + $0x88] sm:$0xff]
      %v1276 = vld [vmem:[#allocation3 + $0x90] sm:$0xff]
      %v1277 = vld [vmem:[#allocation3 + $0x98] sm:$0xff]
      %v1278 = vld [vmem:[#allocation3 + $0xa0] sm:$0xff]
      %v1279 = vld [vmem:[#allocation3 + $0xa8] sm:$0xff]
      %v1280 = vld [vmem:[#allocation3 + $0xb0] sm:$0xff]
      %v1281 = vld [vmem:[#allocation3 + $0xb8] sm:$0xff]
      %v1282 = vld [vmem:[#allocation3 + $0xc0] sm:$0xff]
      %v1283 = vld [vmem:[#allocation3 + $0xc8] sm:$0xff]
      %v1284 = vld [vmem:[#allocation3 + $0xd0] sm:$0xff]
      %v1285 = vld [vmem:[#allocation3 + $0xd8] sm:$0xff]
      %v1286 = vld [vmem:[#allocation3 + $0xe0] sm:$0xff]
      %v1287 = vld [vmem:[#allocation3 + $0xe8] sm:$0xff]
      %v1288 = vld [vmem:[#allocation3 + $0xf0] sm:$0xff]
      %v1289 = vld [vmem:[#allocation3 + $0xf8] sm:$0xff]
      %v1290 = vsel %vm1098, %v917, inf
      %v1291 = vsel %vm1099, %v918, inf
      %v1292 = vsel %vm1100, %v919, inf
      %v1293 = vsel %vm1101, %v920, inf
      %v1294 = vsel %vm1102, %v921, inf
      %v1295 = vsel %vm1103, %v922, inf
      %v1296 = vsel %vm1104, %v923, inf
      %v1297 = vsel %vm1105, %v924, inf
      %v1298 = vsel %vm1106, %v925, inf
      %v1299 = vsel %vm1107, %v926, inf
      %v1300 = vsel %vm1108, %v927, inf
      %v1301 = vsel %vm1109, %v928, inf
      %v1302 = vsel %vm1110, %v929, inf
      %v1303 = vsel %vm1111, %v930, inf
      %v1304 = vsel %vm1112, %v931, inf
      %v1305 = vsel %vm1113, %v932, inf
      %v1306 = vsel %vm1114, %v933, inf
      %v1307 = vsel %vm1115, %v934, inf
      %v1308 = vsel %vm1116, %v935, inf
      %v1309 = vsel %vm1117, %v936, inf
      %v1310 = vsel %vm1118, %v937, inf
      %v1311 = vsel %vm1119, %v938, inf
      %v1312 = vsel %vm1120, %v939, inf
      %v1313 = vsel %vm1121, %v940, inf
      %v1314 = vsel %vm1122, %v941, inf
      %v1315 = vsel %vm1123, %v942, inf
      %v1316 = vsel %vm1124, %v943, inf
      %v1317 = vsel %vm1125, %v944, inf
      %v1318 = vsel %vm1126, %v945, inf
      %v1319 = vsel %vm1127, %v946, inf
      %v1320 = vsel %vm1128, %v947, inf
      %v1321 = vsel %vm1129, %v948, inf
      %v1322 = vmin.f32 %v1258, %v1290
      %v1323 = vmin.f32 %v1259, %v1291
      %v1324 = vmin.f32 %v1260, %v1292
      %v1325 = vmin.f32 %v1261, %v1293
      %v1326 = vmin.f32 %v1262, %v1294
      %v1327 = vmin.f32 %v1263, %v1295
      %v1328 = vmin.f32 %v1264, %v1296
      %v1329 = vmin.f32 %v1265, %v1297
      %v1330 = vmin.f32 %v1266, %v1298
      %v1331 = vmin.f32 %v1267, %v1299
      %v1332 = vmin.f32 %v1268, %v1300
      %v1333 = vmin.f32 %v1269, %v1301
      %v1334 = vmin.f32 %v1270, %v1302
      %v1335 = vmin.f32 %v1271, %v1303
      %v1336 = vmin.f32 %v1272, %v1304
      %v1337 = vmin.f32 %v1273, %v1305
      %v1338 = vmin.f32 %v1274, %v1306
      %v1339 = vmin.f32 %v1275, %v1307
      %v1340 = vmin.f32 %v1276, %v1308
      %v1341 = vmin.f32 %v1277, %v1309
      %v1342 = vmin.f32 %v1278, %v1310
      %v1343 = vmin.f32 %v1279, %v1311
      %v1344 = vmin.f32 %v1280, %v1312
      %v1345 = vmin.f32 %v1281, %v1313
      %v1346 = vmin.f32 %v1282, %v1314
      %v1347 = vmin.f32 %v1283, %v1315
      %v1348 = vmin.f32 %v1284, %v1316
      %v1349 = vmin.f32 %v1285, %v1317
      %v1350 = vmin.f32 %v1286, %v1318
      %v1351 = vmin.f32 %v1287, %v1319
      %v1352 = vmin.f32 %v1288, %v1320
      %v1353 = vmin.f32 %v1289, %v1321
      %1354 = vst [vmem:[#allocation3] sm:$0xff] %v1322
      %1355 = vst [vmem:[#allocation3 + $0x8] sm:$0xff] %v1323
      %1356 = vst [vmem:[#allocation3 + $0x10] sm:$0xff] %v1324
      %1357 = vst [vmem:[#allocation3 + $0x18] sm:$0xff] %v1325
      %1358 = vst [vmem:[#allocation3 + $0x20] sm:$0xff] %v1326
      %1359 = vst [vmem:[#allocation3 + $0x28] sm:$0xff] %v1327
      %1360 = vst [vmem:[#allocation3 + $0x30] sm:$0xff] %v1328
      %1361 = vst [vmem:[#allocation3 + $0x38] sm:$0xff] %v1329
      %1362 = vst [vmem:[#allocation3 + $0x40] sm:$0xff] %v1330
      %1363 = vst [vmem:[#allocation3 + $0x48] sm:$0xff] %v1331
      %1364 = vst [vmem:[#allocation3 + $0x50] sm:$0xff] %v1332
      %1365 = vst [vmem:[#allocation3 + $0x58] sm:$0xff] %v1333
      %1366 = vst [vmem:[#allocation3 + $0x60] sm:$0xff] %v1334
      %1367 = vst [vmem:[#allocation3 + $0x68] sm:$0xff] %v1335
      %1368 = vst [vmem:[#allocation3 + $0x70] sm:$0xff] %v1336
      %1369 = vst [vmem:[#allocation3 + $0x78] sm:$0xff] %v1337
      %1370 = vst [vmem:[#allocation3 + $0x80] sm:$0xff] %v1338
      %1371 = vst [vmem:[#allocation3 + $0x88] sm:$0xff] %v1339
      %1372 = vst [vmem:[#allocation3 + $0x90] sm:$0xff] %v1340
      %1373 = vst [vmem:[#allocation3 + $0x98] sm:$0xff] %v1341
      %1374 = vst [vmem:[#allocation3 + $0xa0] sm:$0xff] %v1342
      %1375 = vst [vmem:[#allocation3 + $0xa8] sm:$0xff] %v1343
      %1376 = vst [vmem:[#allocation3 + $0xb0] sm:$0xff] %v1344
      %1377 = vst [vmem:[#allocation3 + $0xb8] sm:$0xff] %v1345
      %1378 = vst [vmem:[#allocation3 + $0xc0] sm:$0xff] %v1346
      %1379 = vst [vmem:[#allocation3 + $0xc8] sm:$0xff] %v1347
      %1380 = vst [vmem:[#allocation3 + $0xd0] sm:$0xff] %v1348
      %1381 = vst [vmem:[#allocation3 + $0xd8] sm:$0xff] %v1349
      %1382 = vst [vmem:[#allocation3 + $0xe0] sm:$0xff] %v1350
      %1383 = vst [vmem:[#allocation3 + $0xe8] sm:$0xff] %v1351
      %1384 = vst [vmem:[#allocation3 + $0xf0] sm:$0xff] %v1352
      %1385 = vst [vmem:[#allocation3 + $0xf8] sm:$0xff] %v1353
      // Predicated region
      $region49: #{tpu_custom_call.1} parent=43 // pred_check
        %p1386 = pneg %p372
      $region50: #{tpu_custom_call.1} parent=43 // pred_check_branch
        %1388 = sbr.rel (%p1386) target = $region52
      $region51: #{tpu_custom_call.1} parent=43 // pred_region
        %v1389 = vld [vmem:[#allocation2] sm:$0xff]
        %v1390 = vld [vmem:[#allocation2 + $0x8] sm:$0xff]
        %v1391 = vld [vmem:[#allocation2 + $0x10] sm:$0xff]
        %v1392 = vld [vmem:[#allocation2 + $0x18] sm:$0xff]
        %v1393 = vld [vmem:[#allocation2 + $0x20] sm:$0xff]
        %v1394 = vld [vmem:[#allocation2 + $0x28] sm:$0xff]
        %v1395 = vld [vmem:[#allocation2 + $0x30] sm:$0xff]
        %v1396 = vld [vmem:[#allocation2 + $0x38] sm:$0xff]
        %v1397 = vld [vmem:[#allocation2 + $0x40] sm:$0xff]
        %v1398 = vld [vmem:[#allocation2 + $0x48] sm:$0xff]
        %v1399 = vld [vmem:[#allocation2 + $0x50] sm:$0xff]
        %v1400 = vld [vmem:[#allocation2 + $0x58] sm:$0xff]
        %v1401 = vld [vmem:[#allocation2 + $0x60] sm:$0xff]
        %v1402 = vld [vmem:[#allocation2 + $0x68] sm:$0xff]
        %v1403 = vld [vmem:[#allocation2 + $0x70] sm:$0xff]
        %v1404 = vld [vmem:[#allocation2 + $0x78] sm:$0xff]
        %v1405 = vld [vmem:[#allocation2 + $0x80] sm:$0xff]
        %v1406 = vld [vmem:[#allocation2 + $0x88] sm:$0xff]
        %v1407 = vld [vmem:[#allocation2 + $0x90] sm:$0xff]
        %v1408 = vld [vmem:[#allocation2 + $0x98] sm:$0xff]
        %v1409 = vld [vmem:[#allocation2 + $0xa0] sm:$0xff]
        %v1410 = vld [vmem:[#allocation2 + $0xa8] sm:$0xff]
        %v1411 = vld [vmem:[#allocation2 + $0xb0] sm:$0xff]
        %v1412 = vld [vmem:[#allocation2 + $0xb8] sm:$0xff]
        %v1413 = vld [vmem:[#allocation2 + $0xc0] sm:$0xff]
        %v1414 = vld [vmem:[#allocation2 + $0xc8] sm:$0xff]
        %v1415 = vld [vmem:[#allocation2 + $0xd0] sm:$0xff]
        %v1416 = vld [vmem:[#allocation2 + $0xd8] sm:$0xff]
        %v1417 = vld [vmem:[#allocation2 + $0xe0] sm:$0xff]
        %v1418 = vld [vmem:[#allocation2 + $0xe8] sm:$0xff]
        %v1419 = vld [vmem:[#allocation2 + $0xf0] sm:$0xff]
        %v1420 = vld [vmem:[#allocation2 + $0xf8] sm:$0xff]
        %v1421 = vmax.f32 %v1389, %v1390
        %1422 = vmax.xlane.f32.xlu0 %v1421
        %v1423 = vpop.xlane.xlu0 %1422
        %v1424 = vmax.f32 %v1391, %v1392
        %1425 = vmax.xlane.f32.xlu0 %v1424
        %v1426 = vpop.xlane.xlu0 %1425
        %v1427 = vmax.f32 %v1393, %v1394
        %1428 = vmax.xlane.f32.xlu0 %v1427
        %v1429 = vpop.xlane.xlu0 %1428
        %v1430 = vmax.f32 %v1395, %v1396
        %1431 = vmax.xlane.f32.xlu0 %v1430
        %v1432 = vpop.xlane.xlu0 %1431
        %v1433 = vmax.f32 %v1397, %v1398
        %1434 = vmax.xlane.f32.xlu0 %v1433
        %v1435 = vpop.xlane.xlu0 %1434
        %v1436 = vmax.f32 %v1399, %v1400
        %1437 = vmax.xlane.f32.xlu0 %v1436
        %v1438 = vpop.xlane.xlu0 %1437
        %v1439 = vmax.f32 %v1401, %v1402
        %1440 = vmax.xlane.f32.xlu0 %v1439
        %v1441 = vpop.xlane.xlu0 %1440
        %v1442 = vmax.f32 %v1403, %v1404
        %1443 = vmax.xlane.f32.xlu0 %v1442
        %v1444 = vpop.xlane.xlu0 %1443
        %v1445 = vmax.f32 %v1405, %v1406
        %1446 = vmax.xlane.f32.xlu0 %v1445
        %v1447 = vpop.xlane.xlu0 %1446
        %v1448 = vmax.f32 %v1407, %v1408
        %1449 = vmax.xlane.f32.xlu0 %v1448
        %v1450 = vpop.xlane.xlu0 %1449
        %v1451 = vmax.f32 %v1409, %v1410
        %1452 = vmax.xlane.f32.xlu0 %v1451
        %v1453 = vpop.xlane.xlu0 %1452
        %v1454 = vmax.f32 %v1411, %v1412
        %1455 = vmax.xlane.f32.xlu0 %v1454
        %v1456 = vpop.xlane.xlu0 %1455
        %v1457 = vmax.f32 %v1413, %v1414
        %1458 = vmax.xlane.f32.xlu0 %v1457
        %v1459 = vpop.xlane.xlu0 %1458
        %v1460 = vmax.f32 %v1415, %v1416
        %1461 = vmax.xlane.f32.xlu0 %v1460
        %v1462 = vpop.xlane.xlu0 %1461
        %v1463 = vmax.f32 %v1417, %v1418
        %1464 = vmax.xlane.f32.xlu0 %v1463
        %v1465 = vpop.xlane.xlu0 %1464
        %v1466 = vmax.f32 %v1419, %v1420
        %1467 = vmax.xlane.f32.xlu0 %v1466
        %v1468 = vpop.xlane.xlu0 %1467
        %v1469 = vld [vmem:[#allocation3] sm:$0xff]
        %v1470 = vld [vmem:[#allocation3 + $0x8] sm:$0xff]
        %v1471 = vld [vmem:[#allocation3 + $0x10] sm:$0xff]
        %v1472 = vld [vmem:[#allocation3 + $0x18] sm:$0xff]
        %v1473 = vld [vmem:[#allocation3 + $0x20] sm:$0xff]
        %v1474 = vld [vmem:[#allocation3 + $0x28] sm:$0xff]
        %v1475 = vld [vmem:[#allocation3 + $0x30] sm:$0xff]
        %v1476 = vld [vmem:[#allocation3 + $0x38] sm:$0xff]
        %v1477 = vld [vmem:[#allocation3 + $0x40] sm:$0xff]
        %v1478 = vld [vmem:[#allocation3 + $0x48] sm:$0xff]
        %v1479 = vld [vmem:[#allocation3 + $0x50] sm:$0xff]
        %v1480 = vld [vmem:[#allocation3 + $0x58] sm:$0xff]
        %v1481 = vld [vmem:[#allocation3 + $0x60] sm:$0xff]
        %v1482 = vld [vmem:[#allocation3 + $0x68] sm:$0xff]
        %v1483 = vld [vmem:[#allocation3 + $0x70] sm:$0xff]
        %v1484 = vld [vmem:[#allocation3 + $0x78] sm:$0xff]
        %v1485 = vld [vmem:[#allocation3 + $0x80] sm:$0xff]
        %v1486 = vld [vmem:[#allocation3 + $0x88] sm:$0xff]
        %v1487 = vld [vmem:[#allocation3 + $0x90] sm:$0xff]
        %v1488 = vld [vmem:[#allocation3 + $0x98] sm:$0xff]
        %v1489 = vld [vmem:[#allocation3 + $0xa0] sm:$0xff]
        %v1490 = vld [vmem:[#allocation3 + $0xa8] sm:$0xff]
        %v1491 = vld [vmem:[#allocation3 + $0xb0] sm:$0xff]
        %v1492 = vld [vmem:[#allocation3 + $0xb8] sm:$0xff]
        %v1493 = vld [vmem:[#allocation3 + $0xc0] sm:$0xff]
        %v1494 = vld [vmem:[#allocation3 + $0xc8] sm:$0xff]
        %v1495 = vld [vmem:[#allocation3 + $0xd0] sm:$0xff]
        %v1496 = vld [vmem:[#allocation3 + $0xd8] sm:$0xff]
        %v1497 = vld [vmem:[#allocation3 + $0xe0] sm:$0xff]
        %v1498 = vld [vmem:[#allocation3 + $0xe8] sm:$0xff]
        %v1499 = vld [vmem:[#allocation3 + $0xf0] sm:$0xff]
        %v1500 = vld [vmem:[#allocation3 + $0xf8] sm:$0xff]
        %v1501 = vmin.f32 %v1469, %v1470
        %1502 = vmin.xlane.f32.xlu0 %v1501
        %v1503 = vpop.xlane.xlu0 %1502
        %v1504 = vmin.f32 %v1471, %v1472
        %1505 = vmin.xlane.f32.xlu0 %v1504
        %v1506 = vpop.xlane.xlu0 %1505
        %v1507 = vmin.f32 %v1473, %v1474
        %1508 = vmin.xlane.f32.xlu0 %v1507
        %v1509 = vpop.xlane.xlu0 %1508
        %v1510 = vmin.f32 %v1475, %v1476
        %1511 = vmin.xlane.f32.xlu0 %v1510
        %v1512 = vpop.xlane.xlu0 %1511
        %v1513 = vmin.f32 %v1477, %v1478
        %1514 = vmin.xlane.f32.xlu0 %v1513
        %v1515 = vpop.xlane.xlu0 %1514
        %v1516 = vmin.f32 %v1479, %v1480
        %1517 = vmin.xlane.f32.xlu0 %v1516
        %v1518 = vpop.xlane.xlu0 %1517
        %v1519 = vmin.f32 %v1481, %v1482
        %1520 = vmin.xlane.f32.xlu0 %v1519
        %v1521 = vpop.xlane.xlu0 %1520
        %v1522 = vmin.f32 %v1483, %v1484
        %1523 = vmin.xlane.f32.xlu0 %v1522
        %v1524 = vpop.xlane.xlu0 %1523
        %v1525 = vmin.f32 %v1485, %v1486
        %1526 = vmin.xlane.f32.xlu0 %v1525
        %v1527 = vpop.xlane.xlu0 %1526
        %v1528 = vmin.f32 %v1487, %v1488
        %1529 = vmin.xlane.f32.xlu0 %v1528
        %v1530 = vpop.xlane.xlu0 %1529
        %v1531 = vmin.f32 %v1489, %v1490
        %1532 = vmin.xlane.f32.xlu0 %v1531
        %v1533 = vpop.xlane.xlu0 %1532
        %v1534 = vmin.f32 %v1491, %v1492
        %1535 = vmin.xlane.f32.xlu0 %v1534
        %v1536 = vpop.xlane.xlu0 %1535
        %v1537 = vmin.f32 %v1493, %v1494
        %1538 = vmin.xlane.f32.xlu0 %v1537
        %v1539 = vpop.xlane.xlu0 %1538
        %v1540 = vmin.f32 %v1495, %v1496
        %1541 = vmin.xlane.f32.xlu0 %v1540
        %v1542 = vpop.xlane.xlu0 %1541
        %v1543 = vmin.f32 %v1497, %v1498
        %1544 = vmin.xlane.f32.xlu0 %v1543
        %v1545 = vpop.xlane.xlu0 %1544
        %v1546 = vmin.f32 %v1499, %v1500
        %1547 = vmin.xlane.f32.xlu0 %v1546
        %v1548 = vpop.xlane.xlu0 %1547
        %v1549 = vmax.f32 %v1423, 1e-16
        %v1550 = vmax.f32 %v1426, 1e-16
        %v1551 = vmax.f32 %v1429, 1e-16
        %v1552 = vmax.f32 %v1432, 1e-16
        %v1553 = vmax.f32 %v1435, 1e-16
        %v1554 = vmax.f32 %v1438, 1e-16
        %v1555 = vmax.f32 %v1441, 1e-16
        %v1556 = vmax.f32 %v1444, 1e-16
        %v1557 = vmax.f32 %v1447, 1e-16
        %v1558 = vmax.f32 %v1450, 1e-16
        %v1559 = vmax.f32 %v1453, 1e-16
        %v1560 = vmax.f32 %v1456, 1e-16
        %v1561 = vmax.f32 %v1459, 1e-16
        %v1562 = vmax.f32 %v1462, 1e-16
        %v1563 = vmax.f32 %v1465, 1e-16
        %v1564 = vmax.f32 %v1468, 1e-16
        %v1565 = vrsqrt.pop %v1549
        %v1566 = vmul.f32 %v1549, %v1565
        %vm1567 = vcmp.eq.f32.partialorder %v1549, inf
        %v1568 = vsel %vm1567, %v1549, %v1566
        %vm1569 = vcmp.eq.f32.partialorder %v1549, 0.0
        %v1570 = vand.u32 %v1549, 2147483648
        %v1571 = vsel %vm1569, %v1570, %v1568
        %v1572 = vrsqrt.pop %v1550
        %v1573 = vmul.f32 %v1550, %v1572
        %vm1574 = vcmp.eq.f32.partialorder %v1550, inf
        %v1575 = vsel %vm1574, %v1550, %v1573
        %vm1576 = vcmp.eq.f32.partialorder %v1550, 0.0
        %v1577 = vand.u32 %v1550, 2147483648
        %v1578 = vsel %vm1576, %v1577, %v1575
        %v1579 = vrsqrt.pop %v1551
        %v1580 = vmul.f32 %v1551, %v1579
        %vm1581 = vcmp.eq.f32.partialorder %v1551, inf
        %v1582 = vsel %vm1581, %v1551, %v1580
        %vm1583 = vcmp.eq.f32.partialorder %v1551, 0.0
        %v1584 = vand.u32 %v1551, 2147483648
        %v1585 = vsel %vm1583, %v1584, %v1582
        %v1586 = vrsqrt.pop %v1552
        %v1587 = vmul.f32 %v1552, %v1586
        %vm1588 = vcmp.eq.f32.partialorder %v1552, inf
        %v1589 = vsel %vm1588, %v1552, %v1587
        %vm1590 = vcmp.eq.f32.partialorder %v1552, 0.0
        %v1591 = vand.u32 %v1552, 2147483648
        %v1592 = vsel %vm1590, %v1591, %v1589
        %v1593 = vrsqrt.pop %v1553
        %v1594 = vmul.f32 %v1553, %v1593
        %vm1595 = vcmp.eq.f32.partialorder %v1553, inf
        %v1596 = vsel %vm1595, %v1553, %v1594
        %vm1597 = vcmp.eq.f32.partialorder %v1553, 0.0
        %v1598 = vand.u32 %v1553, 2147483648
        %v1599 = vsel %vm1597, %v1598, %v1596
        %v1600 = vrsqrt.pop %v1554
        %v1601 = vmul.f32 %v1554, %v1600
        %vm1602 = vcmp.eq.f32.partialorder %v1554, inf
        %v1603 = vsel %vm1602, %v1554, %v1601
        %vm1604 = vcmp.eq.f32.partialorder %v1554, 0.0
        %v1605 = vand.u32 %v1554, 2147483648
        %v1606 = vsel %vm1604, %v1605, %v1603
        %v1607 = vrsqrt.pop %v1555
        %v1608 = vmul.f32 %v1555, %v1607
        %vm1609 = vcmp.eq.f32.partialorder %v1555, inf
        %v1610 = vsel %vm1609, %v1555, %v1608
        %vm1611 = vcmp.eq.f32.partialorder %v1555, 0.0
        %v1612 = vand.u32 %v1555, 2147483648
        %v1613 = vsel %vm1611, %v1612, %v1610
        %v1614 = vrsqrt.pop %v1556
        %v1615 = vmul.f32 %v1556, %v1614
        %vm1616 = vcmp.eq.f32.partialorder %v1556, inf
        %v1617 = vsel %vm1616, %v1556, %v1615
        %vm1618 = vcmp.eq.f32.partialorder %v1556, 0.0
        %v1619 = vand.u32 %v1556, 2147483648
        %v1620 = vsel %vm1618, %v1619, %v1617
        %v1621 = vrsqrt.pop %v1557
        %v1622 = vmul.f32 %v1557, %v1621
        %vm1623 = vcmp.eq.f32.partialorder %v1557, inf
        %v1624 = vsel %vm1623, %v1557, %v1622
        %vm1625 = vcmp.eq.f32.partialorder %v1557, 0.0
        %v1626 = vand.u32 %v1557, 2147483648
        %v1627 = vsel %vm1625, %v1626, %v1624
        %v1628 = vrsqrt.pop %v1558
        %v1629 = vmul.f32 %v1558, %v1628
        %vm1630 = vcmp.eq.f32.partialorder %v1558, inf
        %v1631 = vsel %vm1630, %v1558, %v1629
        %vm1632 = vcmp.eq.f32.partialorder %v1558, 0.0
        %v1633 = vand.u32 %v1558, 2147483648
        %v1634 = vsel %vm1632, %v1633, %v1631
        %v1635 = vrsqrt.pop %v1559
        %v1636 = vmul.f32 %v1559, %v1635
        %vm1637 = vcmp.eq.f32.partialorder %v1559, inf
        %v1638 = vsel %vm1637, %v1559, %v1636
        %vm1639 = vcmp.eq.f32.partialorder %v1559, 0.0
        %v1640 = vand.u32 %v1559, 2147483648
        %v1641 = vsel %vm1639, %v1640, %v1638
        %v1642 = vrsqrt.pop %v1560
        %v1643 = vmul.f32 %v1560, %v1642
        %vm1644 = vcmp.eq.f32.partialorder %v1560, inf
        %v1645 = vsel %vm1644, %v1560, %v1643
        %vm1646 = vcmp.eq.f32.partialorder %v1560, 0.0
        %v1647 = vand.u32 %v1560, 2147483648
        %v1648 = vsel %vm1646, %v1647, %v1645
        %v1649 = vrsqrt.pop %v1561
        %v1650 = vmul.f32 %v1561, %v1649
        %vm1651 = vcmp.eq.f32.partialorder %v1561, inf
        %v1652 = vsel %vm1651, %v1561, %v1650
        %vm1653 = vcmp.eq.f32.partialorder %v1561, 0.0
        %v1654 = vand.u32 %v1561, 2147483648
        %v1655 = vsel %vm1653, %v1654, %v1652
        %v1656 = vrsqrt.pop %v1562
        %v1657 = vmul.f32 %v1562, %v1656
        %vm1658 = vcmp.eq.f32.partialorder %v1562, inf
        %v1659 = vsel %vm1658, %v1562, %v1657
        %vm1660 = vcmp.eq.f32.partialorder %v1562, 0.0
        %v1661 = vand.u32 %v1562, 2147483648
        %v1662 = vsel %vm1660, %v1661, %v1659
        %v1663 = vrsqrt.pop %v1563
        %v1664 = vmul.f32 %v1563, %v1663
        %vm1665 = vcmp.eq.f32.partialorder %v1563, inf
        %v1666 = vsel %vm1665, %v1563, %v1664
        %vm1667 = vcmp.eq.f32.partialorder %v1563, 0.0
        %v1668 = vand.u32 %v1563, 2147483648
        %v1669 = vsel %vm1667, %v1668, %v1666
        %v1670 = vrsqrt.pop %v1564
        %v1671 = vmul.f32 %v1564, %v1670
        %vm1672 = vcmp.eq.f32.partialorder %v1564, inf
        %v1673 = vsel %vm1672, %v1564, %v1671
        %vm1674 = vcmp.eq.f32.partialorder %v1564, 0.0
        %v1675 = vand.u32 %v1564, 2147483648
        %v1676 = vsel %vm1674, %v1675, %v1673
        %v1677 = vmax.f32 %v1503, 1e-16
        %v1678 = vmax.f32 %v1506, 1e-16
        %v1679 = vmax.f32 %v1509, 1e-16
        %v1680 = vmax.f32 %v1512, 1e-16
        %v1681 = vmax.f32 %v1515, 1e-16
        %v1682 = vmax.f32 %v1518, 1e-16
        %v1683 = vmax.f32 %v1521, 1e-16
        %v1684 = vmax.f32 %v1524, 1e-16
        %v1685 = vmax.f32 %v1527, 1e-16
        %v1686 = vmax.f32 %v1530, 1e-16
        %v1687 = vmax.f32 %v1533, 1e-16
        %v1688 = vmax.f32 %v1536, 1e-16
        %v1689 = vmax.f32 %v1539, 1e-16
        %v1690 = vmax.f32 %v1542, 1e-16
        %v1691 = vmax.f32 %v1545, 1e-16
        %v1692 = vmax.f32 %v1548, 1e-16
        %v1693 = vrsqrt.pop %v1677
        %v1694 = vmul.f32 %v1677, %v1693
        %vm1695 = vcmp.eq.f32.partialorder %v1677, inf
        %v1696 = vsel %vm1695, %v1677, %v1694
        %vm1697 = vcmp.eq.f32.partialorder %v1677, 0.0
        %v1698 = vand.u32 %v1677, 2147483648
        %v1699 = vsel %vm1697, %v1698, %v1696
        %v1700 = vrsqrt.pop %v1678
        %v1701 = vmul.f32 %v1678, %v1700
        %vm1702 = vcmp.eq.f32.partialorder %v1678, inf
        %v1703 = vsel %vm1702, %v1678, %v1701
        %vm1704 = vcmp.eq.f32.partialorder %v1678, 0.0
        %v1705 = vand.u32 %v1678, 2147483648
        %v1706 = vsel %vm1704, %v1705, %v1703
        %v1707 = vrsqrt.pop %v1679
        %v1708 = vmul.f32 %v1679, %v1707
        %vm1709 = vcmp.eq.f32.partialorder %v1679, inf
        %v1710 = vsel %vm1709, %v1679, %v1708
        %vm1711 = vcmp.eq.f32.partialorder %v1679, 0.0
        %v1712 = vand.u32 %v1679, 2147483648
        %v1713 = vsel %vm1711, %v1712, %v1710
        %v1714 = vrsqrt.pop %v1680
        %v1715 = vmul.f32 %v1680, %v1714
        %vm1716 = vcmp.eq.f32.partialorder %v1680, inf
        %v1717 = vsel %vm1716, %v1680, %v1715
        %vm1718 = vcmp.eq.f32.partialorder %v1680, 0.0
        %v1719 = vand.u32 %v1680, 2147483648
        %v1720 = vsel %vm1718, %v1719, %v1717
        %v1721 = vrsqrt.pop %v1681
        %v1722 = vmul.f32 %v1681, %v1721
        %vm1723 = vcmp.eq.f32.partialorder %v1681, inf
        %v1724 = vsel %vm1723, %v1681, %v1722
        %vm1725 = vcmp.eq.f32.partialorder %v1681, 0.0
        %v1726 = vand.u32 %v1681, 2147483648
        %v1727 = vsel %vm1725, %v1726, %v1724
        %v1728 = vrsqrt.pop %v1682
        %v1729 = vmul.f32 %v1682, %v1728
        %vm1730 = vcmp.eq.f32.partialorder %v1682, inf
        %v1731 = vsel %vm1730, %v1682, %v1729
        %vm1732 = vcmp.eq.f32.partialorder %v1682, 0.0
        %v1733 = vand.u32 %v1682, 2147483648
        %v1734 = vsel %vm1732, %v1733, %v1731
        %v1735 = vrsqrt.pop %v1683
        %v1736 = vmul.f32 %v1683, %v1735
        %vm1737 = vcmp.eq.f32.partialorder %v1683, inf
        %v1738 = vsel %vm1737, %v1683, %v1736
        %vm1739 = vcmp.eq.f32.partialorder %v1683, 0.0
        %v1740 = vand.u32 %v1683, 2147483648
        %v1741 = vsel %vm1739, %v1740, %v1738
        %v1742 = vrsqrt.pop %v1684
        %v1743 = vmul.f32 %v1684, %v1742
        %vm1744 = vcmp.eq.f32.partialorder %v1684, inf
        %v1745 = vsel %vm1744, %v1684, %v1743
        %vm1746 = vcmp.eq.f32.partialorder %v1684, 0.0
        %v1747 = vand.u32 %v1684, 2147483648
        %v1748 = vsel %vm1746, %v1747, %v1745
        %v1749 = vrsqrt.pop %v1685
        %v1750 = vmul.f32 %v1685, %v1749
        %vm1751 = vcmp.eq.f32.partialorder %v1685, inf
        %v1752 = vsel %vm1751, %v1685, %v1750
        %vm1753 = vcmp.eq.f32.partialorder %v1685, 0.0
        %v1754 = vand.u32 %v1685, 2147483648
        %v1755 = vsel %vm1753, %v1754, %v1752
        %v1756 = vrsqrt.pop %v1686
        %v1757 = vmul.f32 %v1686, %v1756
        %vm1758 = vcmp.eq.f32.partialorder %v1686, inf
        %v1759 = vsel %vm1758, %v1686, %v1757
        %vm1760 = vcmp.eq.f32.partialorder %v1686, 0.0
        %v1761 = vand.u32 %v1686, 2147483648
        %v1762 = vsel %vm1760, %v1761, %v1759
        %v1763 = vrsqrt.pop %v1687
        %v1764 = vmul.f32 %v1687, %v1763
        %vm1765 = vcmp.eq.f32.partialorder %v1687, inf
        %v1766 = vsel %vm1765, %v1687, %v1764
        %vm1767 = vcmp.eq.f32.partialorder %v1687, 0.0
        %v1768 = vand.u32 %v1687, 2147483648
        %v1769 = vsel %vm1767, %v1768, %v1766
        %v1770 = vrsqrt.pop %v1688
        %v1771 = vmul.f32 %v1688, %v1770
        %vm1772 = vcmp.eq.f32.partialorder %v1688, inf
        %v1773 = vsel %vm1772, %v1688, %v1771
        %vm1774 = vcmp.eq.f32.partialorder %v1688, 0.0
        %v1775 = vand.u32 %v1688, 2147483648
        %v1776 = vsel %vm1774, %v1775, %v1773
        %v1777 = vrsqrt.pop %v1689
        %v1778 = vmul.f32 %v1689, %v1777
        %vm1779 = vcmp.eq.f32.partialorder %v1689, inf
        %v1780 = vsel %vm1779, %v1689, %v1778
        %vm1781 = vcmp.eq.f32.partialorder %v1689, 0.0
        %v1782 = vand.u32 %v1689, 2147483648
        %v1783 = vsel %vm1781, %v1782, %v1780
        %v1784 = vrsqrt.pop %v1690
        %v1785 = vmul.f32 %v1690, %v1784
        %vm1786 = vcmp.eq.f32.partialorder %v1690, inf
        %v1787 = vsel %vm1786, %v1690, %v1785
        %vm1788 = vcmp.eq.f32.partialorder %v1690, 0.0
        %v1789 = vand.u32 %v1690, 2147483648
        %v1790 = vsel %vm1788, %v1789, %v1787
        %v1791 = vrsqrt.pop %v1691
        %v1792 = vmul.f32 %v1691, %v1791
        %vm1793 = vcmp.eq.f32.partialorder %v1691, inf
        %v1794 = vsel %vm1793, %v1691, %v1792
        %vm1795 = vcmp.eq.f32.partialorder %v1691, 0.0
        %v1796 = vand.u32 %v1691, 2147483648
        %v1797 = vsel %vm1795, %v1796, %v1794
        %v1798 = vrsqrt.pop %v1692
        %v1799 = vmul.f32 %v1692, %v1798
        %vm1800 = vcmp.eq.f32.partialorder %v1692, inf
        %v1801 = vsel %vm1800, %v1692, %v1799
        %vm1802 = vcmp.eq.f32.partialorder %v1692, 0.0
        %v1803 = vand.u32 %v1692, 2147483648
        %v1804 = vsel %vm1802, %v1803, %v1801
        %v1805 = vsub.f32 %v1571, %v1699
        %v1806 = vsub.f32 %v1578, %v1706
        %v1807 = vsub.f32 %v1585, %v1713
        %v1808 = vsub.f32 %v1592, %v1720
        %v1809 = vsub.f32 %v1599, %v1727
        %v1810 = vsub.f32 %v1606, %v1734
        %v1811 = vsub.f32 %v1613, %v1741
        %v1812 = vsub.f32 %v1620, %v1748
        %v1813 = vsub.f32 %v1627, %v1755
        %v1814 = vsub.f32 %v1634, %v1762
        %v1815 = vsub.f32 %v1641, %v1769
        %v1816 = vsub.f32 %v1648, %v1776
        %v1817 = vsub.f32 %v1655, %v1783
        %v1818 = vsub.f32 %v1662, %v1790
        %v1819 = vsub.f32 %v1669, %v1797
        %v1820 = vsub.f32 %v1676, %v1804
        %v1821 = vadd.f32 %v1805, 0.3
        %v1822 = vadd.f32 %v1806, 0.3
        %v1823 = vadd.f32 %v1807, 0.3
        %v1824 = vadd.f32 %v1808, 0.3
        %v1825 = vadd.f32 %v1809, 0.3
        %v1826 = vadd.f32 %v1810, 0.3
        %v1827 = vadd.f32 %v1811, 0.3
        %v1828 = vadd.f32 %v1812, 0.3
        %v1829 = vadd.f32 %v1813, 0.3
        %v1830 = vadd.f32 %v1814, 0.3
        %v1831 = vadd.f32 %v1815, 0.3
        %v1832 = vadd.f32 %v1816, 0.3
        %v1833 = vadd.f32 %v1817, 0.3
        %v1834 = vadd.f32 %v1818, 0.3
        %v1835 = vadd.f32 %v1819, 0.3
        %v1836 = vadd.f32 %v1820, 0.3
        %v1837 = vmax.f32 %v1821, 0.0
        %v1838 = vmax.f32 %v1822, 0.0
        %v1839 = vmax.f32 %v1823, 0.0
        %v1840 = vmax.f32 %v1824, 0.0
        %v1841 = vmax.f32 %v1825, 0.0
        %v1842 = vmax.f32 %v1826, 0.0
        %v1843 = vmax.f32 %v1827, 0.0
        %v1844 = vmax.f32 %v1828, 0.0
        %v1845 = vmax.f32 %v1829, 0.0
        %v1846 = vmax.f32 %v1830, 0.0
        %v1847 = vmax.f32 %v1831, 0.0
        %v1848 = vmax.f32 %v1832, 0.0
        %v1849 = vmax.f32 %v1833, 0.0
        %v1850 = vmax.f32 %v1834, 0.0
        %v1851 = vmax.f32 %v1835, 0.0
        %v1852 = vmax.f32 %v1836, 0.0
        %vm1853 = vcmask 7168
        %1854 = vst.msk [vmem:[%s369] sm:$0xff] %vm1853, %v1837
        %1855 = vst.msk [vmem:[%s369 + $0x8] sm:$0xff] %vm1853, %v1838
        %1856 = vst.msk [vmem:[%s369 + $0x10] sm:$0xff] %vm1853, %v1839
        %1857 = vst.msk [vmem:[%s369 + $0x18] sm:$0xff] %vm1853, %v1840
        %1858 = vst.msk [vmem:[%s369 + $0x20] sm:$0xff] %vm1853, %v1841
        %1859 = vst.msk [vmem:[%s369 + $0x28] sm:$0xff] %vm1853, %v1842
        %1860 = vst.msk [vmem:[%s369 + $0x30] sm:$0xff] %vm1853, %v1843
        %1861 = vst.msk [vmem:[%s369 + $0x38] sm:$0xff] %vm1853, %v1844
        %1862 = vst.msk [vmem:[%s369 + $0x40] sm:$0xff] %vm1853, %v1845
        %1863 = vst.msk [vmem:[%s369 + $0x48] sm:$0xff] %vm1853, %v1846
        %1864 = vst.msk [vmem:[%s369 + $0x50] sm:$0xff] %vm1853, %v1847
        %1865 = vst.msk [vmem:[%s369 + $0x58] sm:$0xff] %vm1853, %v1848
        %1866 = vst.msk [vmem:[%s369 + $0x60] sm:$0xff] %vm1853, %v1849
        %1867 = vst.msk [vmem:[%s369 + $0x68] sm:$0xff] %vm1853, %v1850
        %1868 = vst.msk [vmem:[%s369 + $0x70] sm:$0xff] %vm1853, %v1851
        %1869 = vst.msk [vmem:[%s369 + $0x78] sm:$0xff] %vm1853, %v1852
      $region52: #{tpu_custom_call.1} parent=43 // pred_fallthru
        _
      %s1870 = smul.u32 16, %s21
      %p1871 = scmp.lt.s32.totalorder %s1870, 31
      %s1872 = scalar_select %p1871, %s1870, 31
      %s1873 = smul.addr %s1872, 8
      %s1874 = scalar_lea.vmem %s6, %s1873
      // Predicated region
      $region53: #{tpu_custom_call.1} parent=43 // pred_check
        %p1875 = pneg %p203
      $region54: #{tpu_custom_call.1} parent=43 // pred_check_branch
        %1877 = sbr.rel (%p1875) target = $region56
      $region55: #{tpu_custom_call.1} parent=43 // pred_region
        %s1878 = smul.u32 16, %s21
      $region56: #{tpu_custom_call.1} parent=43 // pred_fallthru
        _
    $region44: #{tpu_custom_call.1} parent=5 // pred_fallthru
      _
    %p1879 = scmp.le.s32.totalorder 2, %s12
    // Predicated region
    $region57: #{tpu_custom_call.1} parent=5 // pred_check
      %p1880 = pneg %p1879
    $region58: #{tpu_custom_call.1} parent=5 // pred_check_branch
      %1882 = sbr.rel (%p1880) target = $region60
    $region59: #{tpu_custom_call.1} parent=5 // pred_region
      %s1883 = ssub.s32 %s12, 2
      // Predicated region
      $region61: #{tpu_custom_call.1} parent=59 // pred_check
        %p1884 = pneg %p209
      $region62: #{tpu_custom_call.1} parent=59 // pred_check_branch
        %1886 = sbr.rel (%p1884) target = $region64
      $region63: #{tpu_custom_call.1} parent=59 // pred_region
        %s1887 = smul.u32 16, %s23
        %p1888 = scmp.lt.s32.totalorder %s1887, 31
        %s1889 = scalar_select %p1888, %s1887, 31
        %s1890 = smul.addr %s1889, 8
        %s1891 = scalar_lea.vmem %s6, %s1890
      $region64: #{tpu_custom_call.1} parent=59 // pred_fallthru
        _
    $region60: #{tpu_custom_call.1} parent=5 // pred_fallthru
      _
  $region6: #{tpu_custom_call.1} parent=0 // loop_footer
    %s16 = sadd.s32 1, %s12
  $region7: #{tpu_custom_call.1} parent=0 // loop_footer_branch
    %11 = sbr.rel target = $region3
  $region8: #{tpu_custom_call.1} parent=0 // loop_exit
    _

</llo_original>
